<compile_context>
chip_gen: v6e
topology: v6e:2x2x1
jax: 0.10.0
libtpu: 0.0.40
codegen_flags: <defaults>
</compile_context>

<pallas_src>
import functools

import jax
import jax.numpy as jnp
from jax import lax
from jax.experimental import pallas as pl
from jax.experimental.pallas import tpu as pltpu

LN_EPS = 1e-12


def _bert_embeddings_kernel(ids_smem, tt_ref, word_hbm, pos_ref, type_ref,
                            gamma_ref, beta_ref, out_ref, gathered, sem,
                            *, num_chunks):
    s = pl.program_id(0)            # sequence-tile index (outer grid axis)
    b = pl.program_id(1)            # batch index (inner grid axis)
    tS, H = gathered.shape
    T = type_ref.shape[0]
    V = word_hbm.shape[0]
    ck = tS // num_chunks           # chunk rows (multiple of 8 by construction)
    tok0 = s * tS

    def issue_chunk(c):
        # Fully unrolled: one row DMA per token, all signaling sem[c].
        r0 = c * ck
        for i in range(ck):
            row = ids_smem[b, tok0 + r0 + i]
            # OOB-DMA guard (nn.Embedding would raise on bad ids; we clamp).
            row = jnp.clip(row, 0, V - 1)
            pltpu.make_async_copy(word_hbm.at[pl.ds(row, 1), :],
                                  gathered.at[pl.ds(r0 + i, 1), :],
                                  sem.at[c]).start()

    def wait_chunk(c):
        # All ck row copies of chunk c signal sem[c] with H*itemsize bytes each.
        # A single wait whose descriptor covers ck*H*itemsize bytes (same dtype
        # as the issued copies, dst = union of their destinations) is
        # equivalent to ck individual waits.
        r0 = c * ck
        pltpu.make_async_copy(word_hbm.at[pl.ds(0, ck), :],
                              gathered.at[pl.ds(r0, ck), :],
                              sem.at[c]).wait()

    tts = tt_ref[...]               # (tS, 1) int32, tiny

    issue_chunk(0)
    for c in range(num_chunks):     # static, small (1, 2 or 4)
        if c + 1 < num_chunks:
            issue_chunk(c + 1)      # overlap next chunk's gather with this LN
        r0 = c * ck

        # position + token-type contributions (VPU) while DMAs are in flight
        base = pos_ref[pl.ds(r0, ck), :].astype(jnp.float32)        # (ck, H)
        tt_c = tts[r0:r0 + ck]                                      # (ck, 1)
        for t in range(T):                                          # T is tiny
            mask = (tt_c == t).astype(jnp.float32)
            base = base + mask * type_ref[pl.ds(t, 1), :].astype(jnp.float32)

        wait_chunk(c)

        # sum + LayerNorm over hidden dim (eps=1e-12), lane-dense store
        x = gathered[pl.ds(r0, ck), :].astype(jnp.float32) + base
        mean = jnp.mean(x, axis=-1, keepdims=True)
        var = jnp.mean(jnp.square(x - mean), axis=-1, keepdims=True)
        y = (x - mean) * lax.rsqrt(var + LN_EPS)
        y = y * gamma_ref[...] + beta_ref[...]
        # TODO(synk): nn.Dropout is identity in eval mode; training-mode dropout not implemented.
        out_ref[pl.ds(r0, ck), :] = y.astype(out_ref.dtype)


def _pick_seq_tile(S):
    # Cap at 256 (keeps the unrolled gather-issue loop and v5e VMEM in budget).
    for cand in (256, 128, 64, 32, 16, 8):
        if S % cand == 0:
            return cand
    return S


def _pick_num_chunks(tS):
    # Chunk rows must stay a multiple of 8 (sublane-aligned slices/stores).
    for c in (4, 2):
        if tS % (8 * c) == 0:
            return c
    return 1


def bert_embeddings(input_ids, token_type_ids, word_table, pos_table,
                    type_table, gamma, beta, *, out_dtype=jnp.float32):
    B, S = input_ids.shape
    V, H = word_table.shape
    P = pos_table.shape[0]
    T = type_table.shape[0]
    assert S <= P, "sequence length exceeds max_position_embeddings"
    tS = _pick_seq_tile(S)
    assert S % tS == 0
    num_chunks = _pick_num_chunks(tS)

    # Explicit VMEM budget (v7x has 64 MiB physical / 32 MiB scoped default).
    word_bytes = jnp.dtype(word_table.dtype).itemsize
    out_bytes = jnp.dtype(out_dtype).itemsize
    est = (2 * tS * H * 4              # double-buffered position tile
           + 2 * tS * H * out_bytes    # double-buffered output tile
           + tS * H * word_bytes       # gathered word rows (scratch)
           + 2 * tS * 4                # token-type id tile
           + T * H * 4 + 2 * H * 4)    # small resident tables
    vmem_limit = int(min(64 * 2**20, max(32 * 2**20, 2 * est)))

    kernel = functools.partial(_bert_embeddings_kernel, num_chunks=num_chunks)

    return pl.pallas_call(
        kernel,
        out_shape=jax.ShapeDtypeStruct((B, S, H), out_dtype),
        grid_spec=pltpu.PrefetchScalarGridSpec(
            num_scalar_prefetch=1,                 # input_ids -> SMEM drives the gather
            # Sequence-tile axis OUTER, batch INNER: the position tile's block
            # index depends only on s, so it is not re-DMA'd for every batch row.
            grid=(S // tS, B),
            in_specs=[
                pl.BlockSpec((None, tS, 1), lambda s, b, ids: (b, s, 0)),   # token_type_ids
                pl.BlockSpec(memory_space=pl.ANY),                          # word table stays in HBM
                pl.BlockSpec((tS, H), lambda s, b, ids: (s, 0)),            # position rows for this tile
                pl.BlockSpec((T, H), lambda s, b, ids: (0, 0)),             # token-type table (tiny)
                pl.BlockSpec((1, H), lambda s, b, ids: (0, 0)),             # LN gamma
                pl.BlockSpec((1, H), lambda s, b, ids: (0, 0)),             # LN beta
            ],
            out_specs=pl.BlockSpec((None, tS, H), lambda s, b, ids: (b, s, 0)),
            scratch_shapes=[
                pltpu.VMEM((tS, H), word_table.dtype),       # gathered word rows
                pltpu.SemaphoreType.DMA((num_chunks,)),      # one DMA sem per chunk
            ],
        ),
        compiler_params=pltpu.CompilerParams(
            dimension_semantics=("parallel", "parallel"),    # keep megacore sharding on v7x
            vmem_limit_bytes=vmem_limit),
    )(input_ids.astype(jnp.int32),
      token_type_ids.reshape(B, S, 1).astype(jnp.int32),
      word_table, pos_table, type_table,
      gamma.reshape(1, H).astype(jnp.float32),
      beta.reshape(1, H).astype(jnp.float32))


def _reference(ids, tts, word, pos, typ, gamma, beta):
    S = ids.shape[1]
    x = word[ids] + pos[jnp.arange(S)][None, :, :] + typ[tts]
    mean = x.mean(-1, keepdims=True)
    var = ((x - mean) ** 2).mean(-1, keepdims=True)
    return (x - mean) / jnp.sqrt(var + LN_EPS) * gamma + beta


if __name__ == "__main__":
    B, S, H = 2, 16, 32         # batch, seq, hidden_size
    V, P, T = 64, 32, 2         # vocab_size, max_position_embeddings, type_vocab_size

    key = jax.random.PRNGKey(0)
    k1, k2, k3, k4, k5 = jax.random.split(key, 5)

    word_table = 0.02 * jax.random.normal(k1, (V, H), jnp.float32)
    pos_table = 0.02 * jax.random.normal(k2, (P, H), jnp.float32)
    type_table = 0.02 * jax.random.normal(k3, (T, H), jnp.float32)
    # nn.Embedding(padding_idx=0) zero-initializes row 0.
    word_table = word_table.at[0].set(0.0)
    pos_table = pos_table.at[0].set(0.0)
    type_table = type_table.at[0].set(0.0)

    gamma = jnp.ones((H,), jnp.float32)
    beta = jnp.zeros((H,), jnp.float32)

    input_ids = jax.random.randint(k4, (B, S), 0, V, dtype=jnp.int32)
    token_type_ids = jax.random.randint(k5, (B, S), 0, T, dtype=jnp.int32)

    out = bert_embeddings(input_ids, token_type_ids, word_table, pos_table,
                          type_table, gamma, beta)
    out = jax.block_until_ready(out)

    ref = _reference(input_ids, token_type_ids, word_table, pos_table,
                     type_table, gamma, beta)
    assert out.shape == (B, S, H)
    assert jnp.allclose(out, ref, atol=1e-5, rtol=1e-5), \
        float(jnp.max(jnp.abs(out - ref)))
    print("KERNEL_OK")
</pallas_src>

<mosaic_0001>
module attributes {stable_mosaic.version = 11 : i64} {
  func.func @_bert_embeddings_kernel(%arg0: i32, %arg1: i32, %arg2: memref<2x16xi32, #tpu.memory_space<smem>>, %arg3: memref<1x16x1xi32, #tpu.memory_space<vmem>>, %arg4: memref<64x32xf32, #tpu.memory_space<any>>, %arg5: memref<16x32xf32, #tpu.memory_space<vmem>>, %arg6: memref<2x32xf32, #tpu.memory_space<vmem>>, %arg7: memref<1x32xf32, #tpu.memory_space<vmem>>, %arg8: memref<1x32xf32, #tpu.memory_space<vmem>>, %arg9: memref<1x16x32xf32, #tpu.memory_space<vmem>>, %arg10: memref<16x32xf32, #tpu.memory_space<vmem>>, %arg11: memref<2x!tpu.dma_semaphore, #tpu.memory_space<semaphore_mem>>) attributes {dimension_semantics = [#tpu.dimension_semantics<parallel>, #tpu.dimension_semantics<parallel>], iteration_bounds = array<i64: 1, 2>, scalar_prefetch = 1 : i64, scratch_operands = 2 : i64, tpu.core_type = #tpu.core_type<tc>, window_params = [{transform_indices = @transform_0, window_bounds = array<i64: 1, 16, 1>}, {}, {transform_indices = @transform_2, window_bounds = array<i64: 16, 32>}, {pipeline_mode = #tpu.pipeline_mode<synchronous>, transform_indices = @transform_3, window_bounds = array<i64: 2, 32>}, {pipeline_mode = #tpu.pipeline_mode<synchronous>, transform_indices = @transform_4, window_bounds = array<i64: 1, 32>}, {pipeline_mode = #tpu.pipeline_mode<synchronous>, transform_indices = @transform_5, window_bounds = array<i64: 1, 32>}, {transform_indices = @transform_6, window_bounds = array<i64: 1, 16, 32>}]} {
    %c16_i32 = arith.constant 16 : i32
    %0 = arith.muli %arg0, %c16_i32 : i32
    %c0 = arith.constant 0 : index
    %c0_0 = arith.constant 0 : index
    %c0_1 = arith.constant 0 : index
    %1 = vector.load %arg3[%c0, %c0_0, %c0_1] : memref<1x16x1xi32, #tpu.memory_space<vmem>>, vector<1x16x1xi32>
    %2 = vector.shape_cast %1 : vector<1x16x1xi32> to vector<16x1xi32>
    %c0_i32 = arith.constant 0 : i32
    %3 = arith.addi %0, %c0_i32 : i32
    %c0_i32_2 = arith.constant 0 : i32
    %4 = arith.addi %3, %c0_i32_2 : i32
    %5 = arith.index_cast %arg1 : i32 to index
    %6 = arith.index_cast %4 : i32 to index
    %7 = memref.load %arg2[%5, %6] : memref<2x16xi32, #tpu.memory_space<smem>>
    %c0_i32_3 = arith.constant 0 : i32
    %c63_i32 = arith.constant 63 : i32
    %8 = arith.maxsi %c0_i32_3, %7 : i32
    %9 = arith.minsi %c63_i32, %8 : i32
    %c0_i32_4 = arith.constant 0 : i32
    %c0_i32_5 = arith.constant 0 : i32
    %10 = tpu.memref_slice %arg4[%9, %c0_i32_5] : memref<64x32xf32, #tpu.memory_space<any>> -> memref<1x32xf32, #tpu.memory_space<any>>
    %c0_i32_6 = arith.constant 0 : i32
    %c0_i32_7 = arith.constant 0 : i32
    %11 = tpu.memref_slice %arg10[%c0_i32_6, %c0_i32_7] : memref<16x32xf32, #tpu.memory_space<vmem>> -> memref<1x32xf32, #tpu.memory_space<vmem>>
    %12 = tpu.memref_slice %arg11[%c0_i32_4] : memref<2x!tpu.dma_semaphore, #tpu.memory_space<semaphore_mem>> -> memref<1x!tpu.dma_semaphore, #tpu.memory_space<semaphore_mem>>
    %13 = tpu.memref_squeeze %12 : memref<1x!tpu.dma_semaphore, #tpu.memory_space<semaphore_mem>> -> memref<!tpu.dma_semaphore, #tpu.memory_space<semaphore_mem>>
    tpu.enqueue_dma source(%10 : memref<1x32xf32, #tpu.memory_space<any>>) target(%11 : memref<1x32xf32, #tpu.memory_space<vmem>>) target_semaphore(%13 : memref<!tpu.dma_semaphore, #tpu.memory_space<semaphore_mem>>)
    %c0_i32_8 = arith.constant 0 : i32
    %14 = arith.addi %0, %c0_i32_8 : i32
    %c1_i32 = arith.constant 1 : i32
    %15 = arith.addi %14, %c1_i32 : i32
    %16 = arith.index_cast %arg1 : i32 to index
    %17 = arith.index_cast %15 : i32 to index
    %18 = memref.load %arg2[%16, %17] : memref<2x16xi32, #tpu.memory_space<smem>>
    %c0_i32_9 = arith.constant 0 : i32
    %c63_i32_10 = arith.constant 63 : i32
    %19 = arith.maxsi %c0_i32_9, %18 : i32
    %20 = arith.minsi %c63_i32_10, %19 : i32
    %c0_i32_11 = arith.constant 0 : i32
    %c0_i32_12 = arith.constant 0 : i32
    %21 = tpu.memref_slice %arg4[%20, %c0_i32_12] : memref<64x32xf32, #tpu.memory_space<any>> -> memref<1x32xf32, #tpu.memory_space<any>>
    %c1_i32_13 = arith.constant 1 : i32
    %c0_i32_14 = arith.constant 0 : i32
    %22 = tpu.memref_slice %arg10[%c1_i32_13, %c0_i32_14] : memref<16x32xf32, #tpu.memory_space<vmem>> -> memref<1x32xf32, #tpu.memory_space<vmem>>
    %23 = tpu.memref_slice %arg11[%c0_i32_11] : memref<2x!tpu.dma_semaphore, #tpu.memory_space<semaphore_mem>> -> memref<1x!tpu.dma_semaphore, #tpu.memory_space<semaphore_mem>>
    %24 = tpu.memref_squeeze %23 : memref<1x!tpu.dma_semaphore, #tpu.memory_space<semaphore_mem>> -> memref<!tpu.dma_semaphore, #tpu.memory_space<semaphore_mem>>
    tpu.enqueue_dma source(%21 : memref<1x32xf32, #tpu.memory_space<any>>) target(%22 : memref<1x32xf32, #tpu.memory_space<vmem>>) target_semaphore(%24 : memref<!tpu.dma_semaphore, #tpu.memory_space<semaphore_mem>>)
    %c0_i32_15 = arith.constant 0 : i32
    %25 = arith.addi %0, %c0_i32_15 : i32
    %c2_i32 = arith.constant 2 : i32
    %26 = arith.addi %25, %c2_i32 : i32
    %27 = arith.index_cast %arg1 : i32 to index
    %28 = arith.index_cast %26 : i32 to index
    %29 = memref.load %arg2[%27, %28] : memref<2x16xi32, #tpu.memory_space<smem>>
    %c0_i32_16 = arith.constant 0 : i32
    %c63_i32_17 = arith.constant 63 : i32
    %30 = arith.maxsi %c0_i32_16, %29 : i32
    %31 = arith.minsi %c63_i32_17, %30 : i32
    %c0_i32_18 = arith.constant 0 : i32
    %c0_i32_19 = arith.constant 0 : i32
    %32 = tpu.memref_slice %arg4[%31, %c0_i32_19] : memref<64x32xf32, #tpu.memory_space<any>> -> memref<1x32xf32, #tpu.memory_space<any>>
    %c2_i32_20 = arith.constant 2 : i32
    %c0_i32_21 = arith.constant 0 : i32
    %33 = tpu.memref_slice %arg10[%c2_i32_20, %c0_i32_21] : memref<16x32xf32, #tpu.memory_space<vmem>> -> memref<1x32xf32, #tpu.memory_space<vmem>>
    %34 = tpu.memref_slice %arg11[%c0_i32_18] : memref<2x!tpu.dma_semaphore, #tpu.memory_space<semaphore_mem>> -> memref<1x!tpu.dma_semaphore, #tpu.memory_space<semaphore_mem>>
    %35 = tpu.memref_squeeze %34 : memref<1x!tpu.dma_semaphore, #tpu.memory_space<semaphore_mem>> -> memref<!tpu.dma_semaphore, #tpu.memory_space<semaphore_mem>>
    tpu.enqueue_dma source(%32 : memref<1x32xf32, #tpu.memory_space<any>>) target(%33 : memref<1x32xf32, #tpu.memory_space<vmem>>) target_semaphore(%35 : memref<!tpu.dma_semaphore, #tpu.memory_space<semaphore_mem>>)
    %c0_i32_22 = arith.constant 0 : i32
    %36 = arith.addi %0, %c0_i32_22 : i32
    %c3_i32 = arith.constant 3 : i32
    %37 = arith.addi %36, %c3_i32 : i32
    %38 = arith.index_cast %arg1 : i32 to index
    %39 = arith.index_cast %37 : i32 to index
    %40 = memref.load %arg2[%38, %39] : memref<2x16xi32, #tpu.memory_space<smem>>
    %c0_i32_23 = arith.constant 0 : i32
    %c63_i32_24 = arith.constant 63 : i32
    %41 = arith.maxsi %c0_i32_23, %40 : i32
    %42 = arith.minsi %c63_i32_24, %41 : i32
    %c0_i32_25 = arith.constant 0 : i32
    %c0_i32_26 = arith.constant 0 : i32
    %43 = tpu.memref_slice %arg4[%42, %c0_i32_26] : memref<64x32xf32, #tpu.memory_space<any>> -> memref<1x32xf32, #tpu.memory_space<any>>
    %c3_i32_27 = arith.constant 3 : i32
    %c0_i32_28 = arith.constant 0 : i32
    %44 = tpu.memref_slice %arg10[%c3_i32_27, %c0_i32_28] : memref<16x32xf32, #tpu.memory_space<vmem>> -> memref<1x32xf32, #tpu.memory_space<vmem>>
    %45 = tpu.memref_slice %arg11[%c0_i32_25] : memref<2x!tpu.dma_semaphore, #tpu.memory_space<semaphore_mem>> -> memref<1x!tpu.dma_semaphore, #tpu.memory_space<semaphore_mem>>
    %46 = tpu.memref_squeeze %45 : memref<1x!tpu.dma_semaphore, #tpu.memory_space<semaphore_mem>> -> memref<!tpu.dma_semaphore, #tpu.memory_space<semaphore_mem>>
    tpu.enqueue_dma source(%43 : memref<1x32xf32, #tpu.memory_space<any>>) target(%44 : memref<1x32xf32, #tpu.memory_space<vmem>>) target_semaphore(%46 : memref<!tpu.dma_semaphore, #tpu.memory_space<semaphore_mem>>)
    %c0_i32_29 = arith.constant 0 : i32
    %47 = arith.addi %0, %c0_i32_29 : i32
    %c4_i32 = arith.constant 4 : i32
    %48 = arith.addi %47, %c4_i32 : i32
    %49 = arith.index_cast %arg1 : i32 to index
    %50 = arith.index_cast %48 : i32 to index
    %51 = memref.load %arg2[%49, %50] : memref<2x16xi32, #tpu.memory_space<smem>>
    %c0_i32_30 = arith.constant 0 : i32
    %c63_i32_31 = arith.constant 63 : i32
    %52 = arith.maxsi %c0_i32_30, %51 : i32
    %53 = arith.minsi %c63_i32_31, %52 : i32
    %c0_i32_32 = arith.constant 0 : i32
    %c0_i32_33 = arith.constant 0 : i32
    %54 = tpu.memref_slice %arg4[%53, %c0_i32_33] : memref<64x32xf32, #tpu.memory_space<any>> -> memref<1x32xf32, #tpu.memory_space<any>>
    %c4_i32_34 = arith.constant 4 : i32
    %c0_i32_35 = arith.constant 0 : i32
    %55 = tpu.memref_slice %arg10[%c4_i32_34, %c0_i32_35] : memref<16x32xf32, #tpu.memory_space<vmem>> -> memref<1x32xf32, #tpu.memory_space<vmem>>
    %56 = tpu.memref_slice %arg11[%c0_i32_32] : memref<2x!tpu.dma_semaphore, #tpu.memory_space<semaphore_mem>> -> memref<1x!tpu.dma_semaphore, #tpu.memory_space<semaphore_mem>>
    %57 = tpu.memref_squeeze %56 : memref<1x!tpu.dma_semaphore, #tpu.memory_space<semaphore_mem>> -> memref<!tpu.dma_semaphore, #tpu.memory_space<semaphore_mem>>
    tpu.enqueue_dma source(%54 : memref<1x32xf32, #tpu.memory_space<any>>) target(%55 : memref<1x32xf32, #tpu.memory_space<vmem>>) target_semaphore(%57 : memref<!tpu.dma_semaphore, #tpu.memory_space<semaphore_mem>>)
    %c0_i32_36 = arith.constant 0 : i32
    %58 = arith.addi %0, %c0_i32_36 : i32
    %c5_i32 = arith.constant 5 : i32
    %59 = arith.addi %58, %c5_i32 : i32
    %60 = arith.index_cast %arg1 : i32 to index
    %61 = arith.index_cast %59 : i32 to index
    %62 = memref.load %arg2[%60, %61] : memref<2x16xi32, #tpu.memory_space<smem>>
    %c0_i32_37 = arith.constant 0 : i32
    %c63_i32_38 = arith.constant 63 : i32
    %63 = arith.maxsi %c0_i32_37, %62 : i32
    %64 = arith.minsi %c63_i32_38, %63 : i32
    %c0_i32_39 = arith.constant 0 : i32
    %c0_i32_40 = arith.constant 0 : i32
    %65 = tpu.memref_slice %arg4[%64, %c0_i32_40] : memref<64x32xf32, #tpu.memory_space<any>> -> memref<1x32xf32, #tpu.memory_space<any>>
    %c5_i32_41 = arith.constant 5 : i32
    %c0_i32_42 = arith.constant 0 : i32
    %66 = tpu.memref_slice %arg10[%c5_i32_41, %c0_i32_42] : memref<16x32xf32, #tpu.memory_space<vmem>> -> memref<1x32xf32, #tpu.memory_space<vmem>>
    %67 = tpu.memref_slice %arg11[%c0_i32_39] : memref<2x!tpu.dma_semaphore, #tpu.memory_space<semaphore_mem>> -> memref<1x!tpu.dma_semaphore, #tpu.memory_space<semaphore_mem>>
    %68 = tpu.memref_squeeze %67 : memref<1x!tpu.dma_semaphore, #tpu.memory_space<semaphore_mem>> -> memref<!tpu.dma_semaphore, #tpu.memory_space<semaphore_mem>>
    tpu.enqueue_dma source(%65 : memref<1x32xf32, #tpu.memory_space<any>>) target(%66 : memref<1x32xf32, #tpu.memory_space<vmem>>) target_semaphore(%68 : memref<!tpu.dma_semaphore, #tpu.memory_space<semaphore_mem>>)
    %c0_i32_43 = arith.constant 0 : i32
    %69 = arith.addi %0, %c0_i32_43 : i32
    %c6_i32 = arith.constant 6 : i32
    %70 = arith.addi %69, %c6_i32 : i32
    %71 = arith.index_cast %arg1 : i32 to index
    %72 = arith.index_cast %70 : i32 to index
    %73 = memref.load %arg2[%71, %72] : memref<2x16xi32, #tpu.memory_space<smem>>
    %c0_i32_44 = arith.constant 0 : i32
    %c63_i32_45 = arith.constant 63 : i32
    %74 = arith.maxsi %c0_i32_44, %73 : i32
    %75 = arith.minsi %c63_i32_45, %74 : i32
    %c0_i32_46 = arith.constant 0 : i32
    %c0_i32_47 = arith.constant 0 : i32
    %76 = tpu.memref_slice %arg4[%75, %c0_i32_47] : memref<64x32xf32, #tpu.memory_space<any>> -> memref<1x32xf32, #tpu.memory_space<any>>
    %c6_i32_48 = arith.constant 6 : i32
    %c0_i32_49 = arith.constant 0 : i32
    %77 = tpu.memref_slice %arg10[%c6_i32_48, %c0_i32_49] : memref<16x32xf32, #tpu.memory_space<vmem>> -> memref<1x32xf32, #tpu.memory_space<vmem>>
    %78 = tpu.memref_slice %arg11[%c0_i32_46] : memref<2x!tpu.dma_semaphore, #tpu.memory_space<semaphore_mem>> -> memref<1x!tpu.dma_semaphore, #tpu.memory_space<semaphore_mem>>
    %79 = tpu.memref_squeeze %78 : memref<1x!tpu.dma_semaphore, #tpu.memory_space<semaphore_mem>> -> memref<!tpu.dma_semaphore, #tpu.memory_space<semaphore_mem>>
    tpu.enqueue_dma source(%76 : memref<1x32xf32, #tpu.memory_space<any>>) target(%77 : memref<1x32xf32, #tpu.memory_space<vmem>>) target_semaphore(%79 : memref<!tpu.dma_semaphore, #tpu.memory_space<semaphore_mem>>)
    %c0_i32_50 = arith.constant 0 : i32
    %80 = arith.addi %0, %c0_i32_50 : i32
    %c7_i32 = arith.constant 7 : i32
    %81 = arith.addi %80, %c7_i32 : i32
    %82 = arith.index_cast %arg1 : i32 to index
    %83 = arith.index_cast %81 : i32 to index
    %84 = memref.load %arg2[%82, %83] : memref<2x16xi32, #tpu.memory_space<smem>>
    %c0_i32_51 = arith.constant 0 : i32
    %c63_i32_52 = arith.constant 63 : i32
    %85 = arith.maxsi %c0_i32_51, %84 : i32
    %86 = arith.minsi %c63_i32_52, %85 : i32
    %c0_i32_53 = arith.constant 0 : i32
    %c0_i32_54 = arith.constant 0 : i32
    %87 = tpu.memref_slice %arg4[%86, %c0_i32_54] : memref<64x32xf32, #tpu.memory_space<any>> -> memref<1x32xf32, #tpu.memory_space<any>>
    %c7_i32_55 = arith.constant 7 : i32
    %c0_i32_56 = arith.constant 0 : i32
    %88 = tpu.memref_slice %arg10[%c7_i32_55, %c0_i32_56] : memref<16x32xf32, #tpu.memory_space<vmem>> -> memref<1x32xf32, #tpu.memory_space<vmem>>
    %89 = tpu.memref_slice %arg11[%c0_i32_53] : memref<2x!tpu.dma_semaphore, #tpu.memory_space<semaphore_mem>> -> memref<1x!tpu.dma_semaphore, #tpu.memory_space<semaphore_mem>>
    %90 = tpu.memref_squeeze %89 : memref<1x!tpu.dma_semaphore, #tpu.memory_space<semaphore_mem>> -> memref<!tpu.dma_semaphore, #tpu.memory_space<semaphore_mem>>
    tpu.enqueue_dma source(%87 : memref<1x32xf32, #tpu.memory_space<any>>) target(%88 : memref<1x32xf32, #tpu.memory_space<vmem>>) target_semaphore(%90 : memref<!tpu.dma_semaphore, #tpu.memory_space<semaphore_mem>>)
    %c8_i32 = arith.constant 8 : i32
    %91 = arith.addi %0, %c8_i32 : i32
    %c0_i32_57 = arith.constant 0 : i32
    %92 = arith.addi %91, %c0_i32_57 : i32
    %93 = arith.index_cast %arg1 : i32 to index
    %94 = arith.index_cast %92 : i32 to index
    %95 = memref.load %arg2[%93, %94] : memref<2x16xi32, #tpu.memory_space<smem>>
    %c0_i32_58 = arith.constant 0 : i32
    %c63_i32_59 = arith.constant 63 : i32
    %96 = arith.maxsi %c0_i32_58, %95 : i32
    %97 = arith.minsi %c63_i32_59, %96 : i32
    %c1_i32_60 = arith.constant 1 : i32
    %c0_i32_61 = arith.constant 0 : i32
    %98 = tpu.memref_slice %arg4[%97, %c0_i32_61] : memref<64x32xf32, #tpu.memory_space<any>> -> memref<1x32xf32, #tpu.memory_space<any>>
    %c8_i32_62 = arith.constant 8 : i32
    %c0_i32_63 = arith.constant 0 : i32
    %99 = tpu.memref_slice %arg10[%c8_i32_62, %c0_i32_63] : memref<16x32xf32, #tpu.memory_space<vmem>> -> memref<1x32xf32, #tpu.memory_space<vmem>>
    %100 = tpu.memref_slice %arg11[%c1_i32_60] : memref<2x!tpu.dma_semaphore, #tpu.memory_space<semaphore_mem>> -> memref<1x!tpu.dma_semaphore, #tpu.memory_space<semaphore_mem>>
    %101 = tpu.memref_squeeze %100 : memref<1x!tpu.dma_semaphore, #tpu.memory_space<semaphore_mem>> -> memref<!tpu.dma_semaphore, #tpu.memory_space<semaphore_mem>>
    tpu.enqueue_dma source(%98 : memref<1x32xf32, #tpu.memory_space<any>>) target(%99 : memref<1x32xf32, #tpu.memory_space<vmem>>) target_semaphore(%101 : memref<!tpu.dma_semaphore, #tpu.memory_space<semaphore_mem>>)
    %c8_i32_64 = arith.constant 8 : i32
    %102 = arith.addi %0, %c8_i32_64 : i32
    %c1_i32_65 = arith.constant 1 : i32
    %103 = arith.addi %102, %c1_i32_65 : i32
    %104 = arith.index_cast %arg1 : i32 to index
    %105 = arith.index_cast %103 : i32 to index
    %106 = memref.load %arg2[%104, %105] : memref<2x16xi32, #tpu.memory_space<smem>>
    %c0_i32_66 = arith.constant 0 : i32
    %c63_i32_67 = arith.constant 63 : i32
    %107 = arith.maxsi %c0_i32_66, %106 : i32
    %108 = arith.minsi %c63_i32_67, %107 : i32
    %c1_i32_68 = arith.constant 1 : i32
    %c0_i32_69 = arith.constant 0 : i32
    %109 = tpu.memref_slice %arg4[%108, %c0_i32_69] : memref<64x32xf32, #tpu.memory_space<any>> -> memref<1x32xf32, #tpu.memory_space<any>>
    %c9_i32 = arith.constant 9 : i32
    %c0_i32_70 = arith.constant 0 : i32
    %110 = tpu.memref_slice %arg10[%c9_i32, %c0_i32_70] : memref<16x32xf32, #tpu.memory_space<vmem>> -> memref<1x32xf32, #tpu.memory_space<vmem>>
    %111 = tpu.memref_slice %arg11[%c1_i32_68] : memref<2x!tpu.dma_semaphore, #tpu.memory_space<semaphore_mem>> -> memref<1x!tpu.dma_semaphore, #tpu.memory_space<semaphore_mem>>
    %112 = tpu.memref_squeeze %111 : memref<1x!tpu.dma_semaphore, #tpu.memory_space<semaphore_mem>> -> memref<!tpu.dma_semaphore, #tpu.memory_space<semaphore_mem>>
    tpu.enqueue_dma source(%109 : memref<1x32xf32, #tpu.memory_space<any>>) target(%110 : memref<1x32xf32, #tpu.memory_space<vmem>>) target_semaphore(%112 : memref<!tpu.dma_semaphore, #tpu.memory_space<semaphore_mem>>)
    %c8_i32_71 = arith.constant 8 : i32
    %113 = arith.addi %0, %c8_i32_71 : i32
    %c2_i32_72 = arith.constant 2 : i32
    %114 = arith.addi %113, %c2_i32_72 : i32
    %115 = arith.index_cast %arg1 : i32 to index
    %116 = arith.index_cast %114 : i32 to index
    %117 = memref.load %arg2[%115, %116] : memref<2x16xi32, #tpu.memory_space<smem>>
    %c0_i32_73 = arith.constant 0 : i32
    %c63_i32_74 = arith.constant 63 : i32
    %118 = arith.maxsi %c0_i32_73, %117 : i32
    %119 = arith.minsi %c63_i32_74, %118 : i32
    %c1_i32_75 = arith.constant 1 : i32
    %c0_i32_76 = arith.constant 0 : i32
    %120 = tpu.memref_slice %arg4[%119, %c0_i32_76] : memref<64x32xf32, #tpu.memory_space<any>> -> memref<1x32xf32, #tpu.memory_space<any>>
    %c10_i32 = arith.constant 10 : i32
    %c0_i32_77 = arith.constant 0 : i32
    %121 = tpu.memref_slice %arg10[%c10_i32, %c0_i32_77] : memref<16x32xf32, #tpu.memory_space<vmem>> -> memref<1x32xf32, #tpu.memory_space<vmem>>
    %122 = tpu.memref_slice %arg11[%c1_i32_75] : memref<2x!tpu.dma_semaphore, #tpu.memory_space<semaphore_mem>> -> memref<1x!tpu.dma_semaphore, #tpu.memory_space<semaphore_mem>>
    %123 = tpu.memref_squeeze %122 : memref<1x!tpu.dma_semaphore, #tpu.memory_space<semaphore_mem>> -> memref<!tpu.dma_semaphore, #tpu.memory_space<semaphore_mem>>
    tpu.enqueue_dma source(%120 : memref<1x32xf32, #tpu.memory_space<any>>) target(%121 : memref<1x32xf32, #tpu.memory_space<vmem>>) target_semaphore(%123 : memref<!tpu.dma_semaphore, #tpu.memory_space<semaphore_mem>>)
    %c8_i32_78 = arith.constant 8 : i32
    %124 = arith.addi %0, %c8_i32_78 : i32
    %c3_i32_79 = arith.constant 3 : i32
    %125 = arith.addi %124, %c3_i32_79 : i32
    %126 = arith.index_cast %arg1 : i32 to index
    %127 = arith.index_cast %125 : i32 to index
    %128 = memref.load %arg2[%126, %127] : memref<2x16xi32, #tpu.memory_space<smem>>
    %c0_i32_80 = arith.constant 0 : i32
    %c63_i32_81 = arith.constant 63 : i32
    %129 = arith.maxsi %c0_i32_80, %128 : i32
    %130 = arith.minsi %c63_i32_81, %129 : i32
    %c1_i32_82 = arith.constant 1 : i32
    %c0_i32_83 = arith.constant 0 : i32
    %131 = tpu.memref_slice %arg4[%130, %c0_i32_83] : memref<64x32xf32, #tpu.memory_space<any>> -> memref<1x32xf32, #tpu.memory_space<any>>
    %c11_i32 = arith.constant 11 : i32
    %c0_i32_84 = arith.constant 0 : i32
    %132 = tpu.memref_slice %arg10[%c11_i32, %c0_i32_84] : memref<16x32xf32, #tpu.memory_space<vmem>> -> memref<1x32xf32, #tpu.memory_space<vmem>>
    %133 = tpu.memref_slice %arg11[%c1_i32_82] : memref<2x!tpu.dma_semaphore, #tpu.memory_space<semaphore_mem>> -> memref<1x!tpu.dma_semaphore, #tpu.memory_space<semaphore_mem>>
    %134 = tpu.memref_squeeze %133 : memref<1x!tpu.dma_semaphore, #tpu.memory_space<semaphore_mem>> -> memref<!tpu.dma_semaphore, #tpu.memory_space<semaphore_mem>>
    tpu.enqueue_dma source(%131 : memref<1x32xf32, #tpu.memory_space<any>>) target(%132 : memref<1x32xf32, #tpu.memory_space<vmem>>) target_semaphore(%134 : memref<!tpu.dma_semaphore, #tpu.memory_space<semaphore_mem>>)
    %c8_i32_85 = arith.constant 8 : i32
    %135 = arith.addi %0, %c8_i32_85 : i32
    %c4_i32_86 = arith.constant 4 : i32
    %136 = arith.addi %135, %c4_i32_86 : i32
    %137 = arith.index_cast %arg1 : i32 to index
    %138 = arith.index_cast %136 : i32 to index
    %139 = memref.load %arg2[%137, %138] : memref<2x16xi32, #tpu.memory_space<smem>>
    %c0_i32_87 = arith.constant 0 : i32
    %c63_i32_88 = arith.constant 63 : i32
    %140 = arith.maxsi %c0_i32_87, %139 : i32
    %141 = arith.minsi %c63_i32_88, %140 : i32
    %c1_i32_89 = arith.constant 1 : i32
    %c0_i32_90 = arith.constant 0 : i32
    %142 = tpu.memref_slice %arg4[%141, %c0_i32_90] : memref<64x32xf32, #tpu.memory_space<any>> -> memref<1x32xf32, #tpu.memory_space<any>>
    %c12_i32 = arith.constant 12 : i32
    %c0_i32_91 = arith.constant 0 : i32
    %143 = tpu.memref_slice %arg10[%c12_i32, %c0_i32_91] : memref<16x32xf32, #tpu.memory_space<vmem>> -> memref<1x32xf32, #tpu.memory_space<vmem>>
    %144 = tpu.memref_slice %arg11[%c1_i32_89] : memref<2x!tpu.dma_semaphore, #tpu.memory_space<semaphore_mem>> -> memref<1x!tpu.dma_semaphore, #tpu.memory_space<semaphore_mem>>
    %145 = tpu.memref_squeeze %144 : memref<1x!tpu.dma_semaphore, #tpu.memory_space<semaphore_mem>> -> memref<!tpu.dma_semaphore, #tpu.memory_space<semaphore_mem>>
    tpu.enqueue_dma source(%142 : memref<1x32xf32, #tpu.memory_space<any>>) target(%143 : memref<1x32xf32, #tpu.memory_space<vmem>>) target_semaphore(%145 : memref<!tpu.dma_semaphore, #tpu.memory_space<semaphore_mem>>)
    %c8_i32_92 = arith.constant 8 : i32
    %146 = arith.addi %0, %c8_i32_92 : i32
    %c5_i32_93 = arith.constant 5 : i32
    %147 = arith.addi %146, %c5_i32_93 : i32
    %148 = arith.index_cast %arg1 : i32 to index
    %149 = arith.index_cast %147 : i32 to index
    %150 = memref.load %arg2[%148, %149] : memref<2x16xi32, #tpu.memory_space<smem>>
    %c0_i32_94 = arith.constant 0 : i32
    %c63_i32_95 = arith.constant 63 : i32
    %151 = arith.maxsi %c0_i32_94, %150 : i32
    %152 = arith.minsi %c63_i32_95, %151 : i32
    %c1_i32_96 = arith.constant 1 : i32
    %c0_i32_97 = arith.constant 0 : i32
    %153 = tpu.memref_slice %arg4[%152, %c0_i32_97] : memref<64x32xf32, #tpu.memory_space<any>> -> memref<1x32xf32, #tpu.memory_space<any>>
    %c13_i32 = arith.constant 13 : i32
    %c0_i32_98 = arith.constant 0 : i32
    %154 = tpu.memref_slice %arg10[%c13_i32, %c0_i32_98] : memref<16x32xf32, #tpu.memory_space<vmem>> -> memref<1x32xf32, #tpu.memory_space<vmem>>
    %155 = tpu.memref_slice %arg11[%c1_i32_96] : memref<2x!tpu.dma_semaphore, #tpu.memory_space<semaphore_mem>> -> memref<1x!tpu.dma_semaphore, #tpu.memory_space<semaphore_mem>>
    %156 = tpu.memref_squeeze %155 : memref<1x!tpu.dma_semaphore, #tpu.memory_space<semaphore_mem>> -> memref<!tpu.dma_semaphore, #tpu.memory_space<semaphore_mem>>
    tpu.enqueue_dma source(%153 : memref<1x32xf32, #tpu.memory_space<any>>) target(%154 : memref<1x32xf32, #tpu.memory_space<vmem>>) target_semaphore(%156 : memref<!tpu.dma_semaphore, #tpu.memory_space<semaphore_mem>>)
    %c8_i32_99 = arith.constant 8 : i32
    %157 = arith.addi %0, %c8_i32_99 : i32
    %c6_i32_100 = arith.constant 6 : i32
    %158 = arith.addi %157, %c6_i32_100 : i32
    %159 = arith.index_cast %arg1 : i32 to index
    %160 = arith.index_cast %158 : i32 to index
    %161 = memref.load %arg2[%159, %160] : memref<2x16xi32, #tpu.memory_space<smem>>
    %c0_i32_101 = arith.constant 0 : i32
    %c63_i32_102 = arith.constant 63 : i32
    %162 = arith.maxsi %c0_i32_101, %161 : i32
    %163 = arith.minsi %c63_i32_102, %162 : i32
    %c1_i32_103 = arith.constant 1 : i32
    %c0_i32_104 = arith.constant 0 : i32
    %164 = tpu.memref_slice %arg4[%163, %c0_i32_104] : memref<64x32xf32, #tpu.memory_space<any>> -> memref<1x32xf32, #tpu.memory_space<any>>
    %c14_i32 = arith.constant 14 : i32
    %c0_i32_105 = arith.constant 0 : i32
    %165 = tpu.memref_slice %arg10[%c14_i32, %c0_i32_105] : memref<16x32xf32, #tpu.memory_space<vmem>> -> memref<1x32xf32, #tpu.memory_space<vmem>>
    %166 = tpu.memref_slice %arg11[%c1_i32_103] : memref<2x!tpu.dma_semaphore, #tpu.memory_space<semaphore_mem>> -> memref<1x!tpu.dma_semaphore, #tpu.memory_space<semaphore_mem>>
    %167 = tpu.memref_squeeze %166 : memref<1x!tpu.dma_semaphore, #tpu.memory_space<semaphore_mem>> -> memref<!tpu.dma_semaphore, #tpu.memory_space<semaphore_mem>>
    tpu.enqueue_dma source(%164 : memref<1x32xf32, #tpu.memory_space<any>>) target(%165 : memref<1x32xf32, #tpu.memory_space<vmem>>) target_semaphore(%167 : memref<!tpu.dma_semaphore, #tpu.memory_space<semaphore_mem>>)
    %c8_i32_106 = arith.constant 8 : i32
    %168 = arith.addi %0, %c8_i32_106 : i32
    %c7_i32_107 = arith.constant 7 : i32
    %169 = arith.addi %168, %c7_i32_107 : i32
    %170 = arith.index_cast %arg1 : i32 to index
    %171 = arith.index_cast %169 : i32 to index
    %172 = memref.load %arg2[%170, %171] : memref<2x16xi32, #tpu.memory_space<smem>>
    %c0_i32_108 = arith.constant 0 : i32
    %c63_i32_109 = arith.constant 63 : i32
    %173 = arith.maxsi %c0_i32_108, %172 : i32
    %174 = arith.minsi %c63_i32_109, %173 : i32
    %c1_i32_110 = arith.constant 1 : i32
    %c0_i32_111 = arith.constant 0 : i32
    %175 = tpu.memref_slice %arg4[%174, %c0_i32_111] : memref<64x32xf32, #tpu.memory_space<any>> -> memref<1x32xf32, #tpu.memory_space<any>>
    %c15_i32 = arith.constant 15 : i32
    %c0_i32_112 = arith.constant 0 : i32
    %176 = tpu.memref_slice %arg10[%c15_i32, %c0_i32_112] : memref<16x32xf32, #tpu.memory_space<vmem>> -> memref<1x32xf32, #tpu.memory_space<vmem>>
    %177 = tpu.memref_slice %arg11[%c1_i32_110] : memref<2x!tpu.dma_semaphore, #tpu.memory_space<semaphore_mem>> -> memref<1x!tpu.dma_semaphore, #tpu.memory_space<semaphore_mem>>
    %178 = tpu.memref_squeeze %177 : memref<1x!tpu.dma_semaphore, #tpu.memory_space<semaphore_mem>> -> memref<!tpu.dma_semaphore, #tpu.memory_space<semaphore_mem>>
    tpu.enqueue_dma source(%175 : memref<1x32xf32, #tpu.memory_space<any>>) target(%176 : memref<1x32xf32, #tpu.memory_space<vmem>>) target_semaphore(%178 : memref<!tpu.dma_semaphore, #tpu.memory_space<semaphore_mem>>)
    %c0_113 = arith.constant 0 : index
    %c0_114 = arith.constant 0 : index
    %179 = vector.load %arg5[%c0_113, %c0_114] : memref<16x32xf32, #tpu.memory_space<vmem>>, vector<8x32xf32>
    %180 = vector.extract_strided_slice %2 {offsets = [0, 0], sizes = [8, 1], strides = [1, 1]} : vector<16x1xi32> to vector<8x1xi32>
    %c0_i32_115 = arith.constant 0 : i32
    %181 = vector.broadcast %c0_i32_115 : i32 to vector<8x1xi32>
    %182 = arith.cmpi eq, %180, %181 : vector<8x1xi32>
    %183 = arith.extui %182 : vector<8x1xi1> to vector<8x1xi32>
    %184 = arith.sitofp %183 : vector<8x1xi32> to vector<8x1xf32>
    %c0_116 = arith.constant 0 : index
    %c0_117 = arith.constant 0 : index
    %185 = vector.load %arg6[%c0_116, %c0_117] : memref<2x32xf32, #tpu.memory_space<vmem>>, vector<1x32xf32>
    %186 = vector.broadcast %184 : vector<8x1xf32> to vector<8x32xf32>
    %187 = vector.broadcast %185 : vector<1x32xf32> to vector<8x32xf32>
    %188 = arith.mulf %186, %187 : vector<8x32xf32>
    %189 = arith.addf %179, %188 : vector<8x32xf32>
    %c1_i32_118 = arith.constant 1 : i32
    %190 = vector.broadcast %c1_i32_118 : i32 to vector<8x1xi32>
    %191 = arith.cmpi eq, %180, %190 : vector<8x1xi32>
    %192 = arith.extui %191 : vector<8x1xi1> to vector<8x1xi32>
    %193 = arith.sitofp %192 : vector<8x1xi32> to vector<8x1xf32>
    %c1 = arith.constant 1 : index
    %c0_119 = arith.constant 0 : index
    %194 = vector.load %arg6[%c1, %c0_119] : memref<2x32xf32, #tpu.memory_space<vmem>>, vector<1x32xf32>
    %195 = vector.broadcast %193 : vector<8x1xf32> to vector<8x32xf32>
    %196 = vector.broadcast %194 : vector<1x32xf32> to vector<8x32xf32>
    %197 = arith.mulf %195, %196 : vector<8x32xf32>
    %198 = arith.addf %189, %197 : vector<8x32xf32>
    %c0_i32_120 = arith.constant 0 : i32
    %c0_i32_121 = arith.constant 0 : i32
    %c0_i32_122 = arith.constant 0 : i32
    %199 = tpu.memref_slice %arg4[%c0_i32_121, %c0_i32_122] : memref<64x32xf32, #tpu.memory_space<any>> -> memref<8x32xf32, #tpu.memory_space<any>>
    %c0_i32_123 = arith.constant 0 : i32
    %c0_i32_124 = arith.constant 0 : i32
    %200 = tpu.memref_slice %arg10[%c0_i32_123, %c0_i32_124] : memref<16x32xf32, #tpu.memory_space<vmem>> -> memref<8x32xf32, #tpu.memory_space<vmem>>
    %201 = tpu.memref_slice %arg11[%c0_i32_120] : memref<2x!tpu.dma_semaphore, #tpu.memory_space<semaphore_mem>> -> memref<1x!tpu.dma_semaphore, #tpu.memory_space<semaphore_mem>>
    %202 = tpu.memref_squeeze %201 : memref<1x!tpu.dma_semaphore, #tpu.memory_space<semaphore_mem>> -> memref<!tpu.dma_semaphore, #tpu.memory_space<semaphore_mem>>
    tpu.wait_dma2 semaphore(%202 : memref<!tpu.dma_semaphore, #tpu.memory_space<semaphore_mem>>) src(%199 : memref<8x32xf32, #tpu.memory_space<any>>) dst(%200 : memref<8x32xf32, #tpu.memory_space<vmem>>)
    %c0_125 = arith.constant 0 : index
    %c0_126 = arith.constant 0 : index
    %203 = vector.load %arg10[%c0_125, %c0_126] : memref<16x32xf32, #tpu.memory_space<vmem>>, vector<8x32xf32>
    %204 = arith.addf %203, %198 : vector<8x32xf32>
    %cst = arith.constant dense<0.000000e+00> : vector<8xf32>
    %205 = vector.multi_reduction <add>, %204, %cst [1] : vector<8x32xf32> to vector<8xf32>
    %206 = vector.shape_cast %205 : vector<8xf32> to vector<8x1xf32>
    %cst_127 = arith.constant 3.200000e+01 : f32
    %207 = vector.broadcast %cst_127 : f32 to vector<8x1xf32>
    %208 = arith.divf %206, %207 : vector<8x1xf32>
    %209 = vector.broadcast %208 : vector<8x1xf32> to vector<8x32xf32>
    %210 = arith.subf %204, %209 : vector<8x32xf32>
    %211 = arith.mulf %210, %210 : vector<8x32xf32>
    %cst_128 = arith.constant dense<0.000000e+00> : vector<8xf32>
    %212 = vector.multi_reduction <add>, %211, %cst_128 [1] : vector<8x32xf32> to vector<8xf32>
    %213 = vector.shape_cast %212 : vector<8xf32> to vector<8x1xf32>
    %cst_129 = arith.constant 3.200000e+01 : f32
    %214 = vector.broadcast %cst_129 : f32 to vector<8x1xf32>
    %215 = arith.divf %213, %214 : vector<8x1xf32>
    %216 = vector.broadcast %208 : vector<8x1xf32> to vector<8x32xf32>
    %217 = arith.subf %204, %216 : vector<8x32xf32>
    %cst_130 = arith.constant 9.99999996E-13 : f32
    %218 = vector.broadcast %cst_130 : f32 to vector<8x1xf32>
    %219 = arith.addf %215, %218 : vector<8x1xf32>
    %220 = math.rsqrt %219 : vector<8x1xf32>
    %221 = vector.broadcast %220 : vector<8x1xf32> to vector<8x32xf32>
    %222 = arith.mulf %217, %221 : vector<8x32xf32>
    %c0_131 = arith.constant 0 : index
    %c0_132 = arith.constant 0 : index
    %223 = vector.load %arg7[%c0_131, %c0_132] : memref<1x32xf32, #tpu.memory_space<vmem>>, vector<1x32xf32>
    %224 = vector.broadcast %223 : vector<1x32xf32> to vector<8x32xf32>
    %225 = arith.mulf %222, %224 : vector<8x32xf32>
    %c0_133 = arith.constant 0 : index
    %c0_134 = arith.constant 0 : index
    %226 = vector.load %arg8[%c0_133, %c0_134] : memref<1x32xf32, #tpu.memory_space<vmem>>, vector<1x32xf32>
    %227 = vector.broadcast %226 : vector<1x32xf32> to vector<8x32xf32>
    %228 = arith.addf %225, %227 : vector<8x32xf32>
    %c0_135 = arith.constant 0 : index
    %c0_136 = arith.constant 0 : index
    %c0_137 = arith.constant 0 : index
    %229 = vector.load %arg9[%c0_135, %c0_136, %c0_137] : memref<1x16x32xf32, #tpu.memory_space<vmem>>, vector<1x8x32xf32>
    %230 = vector.shape_cast %229 : vector<1x8x32xf32> to vector<8x32xf32>
    %231 = vector.shape_cast %228 : vector<8x32xf32> to vector<1x8x32xf32>
    tpu.vector_store %arg9[%c0_135, %c0_136, %c0_137], %231 {strides = array<i32>} : memref<1x16x32xf32, #tpu.memory_space<vmem>>, vector<1x8x32xf32>,
    %c8 = arith.constant 8 : index
    %c0_138 = arith.constant 0 : index
    %232 = vector.load %arg5[%c8, %c0_138] : memref<16x32xf32, #tpu.memory_space<vmem>>, vector<8x32xf32>
    %233 = vector.extract_strided_slice %2 {offsets = [8, 0], sizes = [8, 1], strides = [1, 1]} : vector<16x1xi32> to vector<8x1xi32>
    %c0_i32_139 = arith.constant 0 : i32
    %234 = vector.broadcast %c0_i32_139 : i32 to vector<8x1xi32>
    %235 = arith.cmpi eq, %233, %234 : vector<8x1xi32>
    %236 = arith.extui %235 : vector<8x1xi1> to vector<8x1xi32>
    %237 = arith.sitofp %236 : vector<8x1xi32> to vector<8x1xf32>
    %c0_140 = arith.constant 0 : index
    %c0_141 = arith.constant 0 : index
    %238 = vector.load %arg6[%c0_140, %c0_141] : memref<2x32xf32, #tpu.memory_space<vmem>>, vector<1x32xf32>
    %239 = vector.broadcast %237 : vector<8x1xf32> to vector<8x32xf32>
    %240 = vector.broadcast %238 : vector<1x32xf32> to vector<8x32xf32>
    %241 = arith.mulf %239, %240 : vector<8x32xf32>
    %242 = arith.addf %232, %241 : vector<8x32xf32>
    %c1_i32_142 = arith.constant 1 : i32
    %243 = vector.broadcast %c1_i32_142 : i32 to vector<8x1xi32>
    %244 = arith.cmpi eq, %233, %243 : vector<8x1xi32>
    %245 = arith.extui %244 : vector<8x1xi1> to vector<8x1xi32>
    %246 = arith.sitofp %245 : vector<8x1xi32> to vector<8x1xf32>
    %c1_143 = arith.constant 1 : index
    %c0_144 = arith.constant 0 : index
    %247 = vector.load %arg6[%c1_143, %c0_144] : memref<2x32xf32, #tpu.memory_space<vmem>>, vector<1x32xf32>
    %248 = vector.broadcast %246 : vector<8x1xf32> to vector<8x32xf32>
    %249 = vector.broadcast %247 : vector<1x32xf32> to vector<8x32xf32>
    %250 = arith.mulf %248, %249 : vector<8x32xf32>
    %251 = arith.addf %242, %250 : vector<8x32xf32>
    %c1_i32_145 = arith.constant 1 : i32
    %c0_i32_146 = arith.constant 0 : i32
    %c0_i32_147 = arith.constant 0 : i32
    %252 = tpu.memref_slice %arg4[%c0_i32_146, %c0_i32_147] : memref<64x32xf32, #tpu.memory_space<any>> -> memref<8x32xf32, #tpu.memory_space<any>>
    %c8_i32_148 = arith.constant 8 : i32
    %c0_i32_149 = arith.constant 0 : i32
    %253 = tpu.memref_slice %arg10[%c8_i32_148, %c0_i32_149] : memref<16x32xf32, #tpu.memory_space<vmem>> -> memref<8x32xf32, #tpu.memory_space<vmem>>
    %254 = tpu.memref_slice %arg11[%c1_i32_145] : memref<2x!tpu.dma_semaphore, #tpu.memory_space<semaphore_mem>> -> memref<1x!tpu.dma_semaphore, #tpu.memory_space<semaphore_mem>>
    %255 = tpu.memref_squeeze %254 : memref<1x!tpu.dma_semaphore, #tpu.memory_space<semaphore_mem>> -> memref<!tpu.dma_semaphore, #tpu.memory_space<semaphore_mem>>
    tpu.wait_dma2 semaphore(%255 : memref<!tpu.dma_semaphore, #tpu.memory_space<semaphore_mem>>) src(%252 : memref<8x32xf32, #tpu.memory_space<any>>) dst(%253 : memref<8x32xf32, #tpu.memory_space<vmem>>)
    %c8_150 = arith.constant 8 : index
    %c0_151 = arith.constant 0 : index
    %256 = vector.load %arg10[%c8_150, %c0_151] : memref<16x32xf32, #tpu.memory_space<vmem>>, vector<8x32xf32>
    %257 = arith.addf %256, %251 : vector<8x32xf32>
    %cst_152 = arith.constant dense<0.000000e+00> : vector<8xf32>
    %258 = vector.multi_reduction <add>, %257, %cst_152 [1] : vector<8x32xf32> to vector<8xf32>
    %259 = vector.shape_cast %258 : vector<8xf32> to vector<8x1xf32>
    %cst_153 = arith.constant 3.200000e+01 : f32
    %260 = vector.broadcast %cst_153 : f32 to vector<8x1xf32>
    %261 = arith.divf %259, %260 : vector<8x1xf32>
    %262 = vector.broadcast %261 : vector<8x1xf32> to vector<8x32xf32>
    %263 = arith.subf %257, %262 : vector<8x32xf32>
    %264 = arith.mulf %263, %263 : vector<8x32xf32>
    %cst_154 = arith.constant dense<0.000000e+00> : vector<8xf32>
    %265 = vector.multi_reduction <add>, %264, %cst_154 [1] : vector<8x32xf32> to vector<8xf32>
    %266 = vector.shape_cast %265 : vector<8xf32> to vector<8x1xf32>
    %cst_155 = arith.constant 3.200000e+01 : f32
    %267 = vector.broadcast %cst_155 : f32 to vector<8x1xf32>
    %268 = arith.divf %266, %267 : vector<8x1xf32>
    %269 = vector.broadcast %261 : vector<8x1xf32> to vector<8x32xf32>
    %270 = arith.subf %257, %269 : vector<8x32xf32>
    %cst_156 = arith.constant 9.99999996E-13 : f32
    %271 = vector.broadcast %cst_156 : f32 to vector<8x1xf32>
    %272 = arith.addf %268, %271 : vector<8x1xf32>
    %273 = math.rsqrt %272 : vector<8x1xf32>
    %274 = vector.broadcast %273 : vector<8x1xf32> to vector<8x32xf32>
    %275 = arith.mulf %270, %274 : vector<8x32xf32>
    %c0_157 = arith.constant 0 : index
    %c0_158 = arith.constant 0 : index
    %276 = vector.load %arg7[%c0_157, %c0_158] : memref<1x32xf32, #tpu.memory_space<vmem>>, vector<1x32xf32>
    %277 = vector.broadcast %276 : vector<1x32xf32> to vector<8x32xf32>
    %278 = arith.mulf %275, %277 : vector<8x32xf32>
    %c0_159 = arith.constant 0 : index
    %c0_160 = arith.constant 0 : index
    %279 = vector.load %arg8[%c0_159, %c0_160] : memref<1x32xf32, #tpu.memory_space<vmem>>, vector<1x32xf32>
    %280 = vector.broadcast %279 : vector<1x32xf32> to vector<8x32xf32>
    %281 = arith.addf %278, %280 : vector<8x32xf32>
    %c0_161 = arith.constant 0 : index
    %c8_162 = arith.constant 8 : index
    %c0_163 = arith.constant 0 : index
    %282 = vector.load %arg9[%c0_161, %c8_162, %c0_163] : memref<1x16x32xf32, #tpu.memory_space<vmem>>, vector<1x8x32xf32>
    %283 = vector.shape_cast %282 : vector<1x8x32xf32> to vector<8x32xf32>
    %284 = vector.shape_cast %281 : vector<8x32xf32> to vector<1x8x32xf32>
    tpu.vector_store %arg9[%c0_161, %c8_162, %c0_163], %284 {strides = array<i32>} : memref<1x16x32xf32, #tpu.memory_space<vmem>>, vector<1x8x32xf32>,
    return
  }
  func.func @transform_0(%arg0: i32, %arg1: i32, %arg2: memref<2x16xi32, #tpu.memory_space<smem>>) -> (i32, i32, i32) {
    %c0_i32 = arith.constant 0 : i32
    %c0_i32_0 = arith.constant 0 : i32
    return %arg1, %arg0, %c0_i32 : i32, i32, i32
  }
  func.func @transform_2(%arg0: i32, %arg1: i32, %arg2: memref<2x16xi32, #tpu.memory_space<smem>>) -> (i32, i32) {
    %c0_i32 = arith.constant 0 : i32
    %c0_i32_0 = arith.constant 0 : i32
    return %arg0, %c0_i32 : i32, i32
  }
  func.func @transform_3(%arg0: i32, %arg1: i32, %arg2: memref<2x16xi32, #tpu.memory_space<smem>>) -> (i32, i32) {
    %c0_i32 = arith.constant 0 : i32
    %c0_i32_0 = arith.constant 0 : i32
    %c0_i32_1 = arith.constant 0 : i32
    return %c0_i32, %c0_i32_0 : i32, i32
  }
  func.func @transform_4(%arg0: i32, %arg1: i32, %arg2: memref<2x16xi32, #tpu.memory_space<smem>>) -> (i32, i32) {
    %c0_i32 = arith.constant 0 : i32
    %c0_i32_0 = arith.constant 0 : i32
    %c0_i32_1 = arith.constant 0 : i32
    return %c0_i32, %c0_i32_0 : i32, i32
  }
  func.func @transform_5(%arg0: i32, %arg1: i32, %arg2: memref<2x16xi32, #tpu.memory_space<smem>>) -> (i32, i32) {
    %c0_i32 = arith.constant 0 : i32
    %c0_i32_0 = arith.constant 0 : i32
    %c0_i32_1 = arith.constant 0 : i32
    return %c0_i32, %c0_i32_0 : i32, i32
  }
  func.func @transform_6(%arg0: i32, %arg1: i32, %arg2: memref<2x16xi32, #tpu.memory_space<smem>>) -> (i32, i32, i32) {
    %c0_i32 = arith.constant 0 : i32
    %c0_i32_0 = arith.constant 0 : i32
    return %arg1, %arg0, %c0_i32 : i32, i32, i32
  }
}

</mosaic_0001>

<llo_original>
// kernel: tpu_custom_call.1
$region0: #{tpu_custom_call.1}
  #allocation0 [shape = 'u32[]', space=smem, size = 0x4, offset = 0x4, fixed_abs, tag = 'smem constant byte address 0x4 - core index']
  #allocation1 [shape = 'u32[144,128]{1,0:T(1,128)}', space=vmem, size = 0x12000, scoped, tag = 'internal scratch']
  #allocation2 [shape = 'f32[16,32]{1,0:T(8,128)}', space=vmem, size = 0x2000, scoped, tag = 'scratch operand']
  #allocation3 [shape = 's32[2]{0}', space=sflag, size = 0x8, scoped, tag = 'scratch operand']
  #allocation4 [shape = 's32[1]{0}', space=sflag, size = 0x4, scoped, tag = 'scoped memory for tpu_custom_call.1']
  #allocation5 [shape = 'u8[1024]{0}', space=smem, size = 0x400, scoped, tag = 'prefetched SMEM operand 0']
  #allocation8 [shape = 's32[]', space=sflag, size = 0x4, offset = 0, fixed_abs, tag = 'sflag constant byte address 0x0 - dummy sync flag']
  #allocation9 [shape = 's32[]', space=sflag, size = 0x4, offset = 0, fixed_abs, tag = 'sflag constant byte address 0x0 - dummy sync flag']
  #allocation10 [shape = 's32[]', space=sflag, size = 0x4, offset = 0, fixed_abs, tag = 'sflag constant byte address 0x0 - dummy sync flag']
  #allocation11 [shape = 's32[]', space=sflag, size = 0x4, offset = 0, fixed_abs, tag = 'sflag constant byte address 0x0 - dummy sync flag']
  #allocation12 [shape = 's32[]', space=sflag, size = 0x4, offset = 0, fixed_abs, tag = 'sflag constant byte address 0x0 - dummy sync flag']
  #allocation13 [shape = 's32[]', space=sflag, size = 0x4, offset = 0, fixed_abs, tag = 'sflag constant byte address 0x0 - dummy sync flag']
  #allocation14 [shape = 's32[]', space=sflag, size = 0x4, offset = 0, fixed_abs, tag = 'sflag constant byte address 0x0 - dummy sync flag']
  #allocation15 [shape = 's32[]', space=sflag, size = 0x4, offset = 0, fixed_abs, tag = 'sflag constant byte address 0x0 - dummy sync flag']
  #allocation16 [shape = 's32[]', space=sflag, size = 0x4, offset = 0, fixed_abs, tag = 'sflag constant byte address 0x0 - dummy sync flag']
  #allocation17 [shape = 's32[]', space=sflag, size = 0x4, offset = 0, fixed_abs, tag = 'sflag constant byte address 0x0 - dummy sync flag']
  #allocation18 [shape = 's32[]', space=sflag, size = 0x4, offset = 0, fixed_abs, tag = 'sflag constant byte address 0x0 - dummy sync flag']
  #allocation19 [shape = 's32[]', space=sflag, size = 0x4, offset = 0, fixed_abs, tag = 'sflag constant byte address 0x0 - dummy sync flag']
  #allocation20 [shape = 's32[]', space=sflag, size = 0x4, offset = 0, fixed_abs, tag = 'sflag constant byte address 0x0 - dummy sync flag']
  #allocation21 [shape = 's32[]', space=sflag, size = 0x4, offset = 0, fixed_abs, tag = 'sflag constant byte address 0x0 - dummy sync flag']
  #allocation22 [shape = 's32[]', space=sflag, size = 0x4, offset = 0, fixed_abs, tag = 'sflag constant byte address 0x0 - dummy sync flag']
  #allocation23 [shape = 's32[]', space=sflag, size = 0x4, offset = 0, fixed_abs, tag = 'sflag constant byte address 0x0 - dummy sync flag']
  %s0 = inlined_call_operand.vmem [shape: s32[2,16], index: 0, kind: input, shape index: {}]
  %s1 = inlined_call_operand.vmem [shape: s32[2,16,1], index: 1, kind: input, shape index: {}]
  %s2 = inlined_call_operand.vmem [shape: f32[64,32], index: 2, kind: input, shape index: {}]
  %s3 = inlined_call_operand.vmem [shape: f32[32,32], index: 3, kind: input, shape index: {}]
  %s4 = inlined_call_operand.vmem [shape: f32[2,32], index: 4, kind: input, shape index: {}]
  %s5 = inlined_call_operand.vmem [shape: f32[1,32], index: 5, kind: input, shape index: {}]
  %s6 = inlined_call_operand.vmem [shape: f32[1,32], index: 6, kind: input, shape index: {}]
  %s7 = inlined_call_operand.hbm [shape: f32[2,16,32], index: 7, kind: output, shape index: {}]
  %s8 = sld [smem:[#allocation0]]
  $region533: #{tpu_custom_call.1} parent=0
    _
  %s10 = ssub.s32 1, %s8
  %s11 = scalar_select 0, %s10, %s8
  %s12 = sshll.u32 %s0, 4
  %s13 = int_to_ptr.vmem [resolvable:$true] %s12
  %15 = dma.vmem_to_smem %s13, 32, [#allocation5], [#allocation4]
  %16 = dma.done [#allocation4], 32
  %17 = sfence
  $region1: #{tpu_custom_call.1} parent=0
    #allocation6 [shape = 'u8[16384]{0}', space=vmem, size = 0x4000, scoped, tag = 'output window, operand 0']
    #allocation7 [shape = 's32[2]{0}', space=sflag, size = 0x8, scoped, tag = 'scoped memory for tpu_custom_call.1']
    %18 = vsyncpa [#allocation7], 0
    %s19 = scalar_lea.sflag [#allocation7], 1
    %20 = vsyncpa %s19, 0
    loop: start=0, step=1, limit=4
    $region2: #{tpu_custom_call.1} parent=1 // loop_pre_header
      _
    $region3: #{tpu_custom_call.1} parent=1 // loop_header
      %s22 = sphi 0, %s26
      %p23 = scmp.ge.s32.totalorder %s22, 4
      %s29 = sphi 0, %s41
      %s30 = sphi 0, %s37
      %s31 = sphi 0, %s29
      %s32 = sphi 0, %s30
      %s33 = sphi 0, %s31
      %s34 = sphi 0, %s32
      %s46 = sphi 0, %s48
      %s49 = sphi 0, %s46
      %s50 = sphi 0, %s49
      %s66 = sphi 0, %s50
      %s72 = sphi 0, %s74
      %s75 = sphi 0, %s72
      %s76 = sphi 0, %s75
      %s92 = sphi 0, %s76
      %s96 = sphi 0, %s96
      %s98 = sphi 0, %s96
      %s99 = sphi 0, %s98
      %s113 = sphi 0, %s99
      %s117 = sphi 0, %s117
      %s119 = sphi 0, %s117
      %s120 = sphi 0, %s119
      %s134 = sphi 0, %s120
      %s138 = sphi 0, %s138
      %s140 = sphi 0, %s138
      %s141 = sphi 0, %s140
      %s155 = sphi 0, %s141
      %s163 = sphi 0, %s165
      %s166 = sphi 0, %s163
      %s167 = sphi 0, %s166
      %s183 = sphi 0, %s167
    $region4: #{tpu_custom_call.1} parent=1 // loop_header_branch
      %25 = sbr.rel (%p23) target = $region8
    $region5: #{tpu_custom_call.1} parent=1 // loop_body
      %s27 = ssub.s32 %s22, 1
      %s28 = ssub.s32 %s22, 2
      %s35 = sadd.s32 1, %s30
      %p36 = scmp.ge.s32.totalorder %s35, 2
      %s37 = scalar_select %p36, 0, %s35
      %s38 = sadd.s32 1, %s29
      %s39 = scalar_select %p36, %s38, %s29
      %p40 = scmp.ge.s32.totalorder %s39, 1
      %s41 = scalar_select %p40, 0, %s39
      %s42 = ssub.s32 %s30, %s37
      %s43 = ssub.s32 %s29, %s41
      %s44 = sor.u32 %s42, %s43
      %p45 = scmp.eq.s32.totalorder %s44, 0
      %s47 = sadd.s32 %s46, 1
      %s48 = scalar_select %p45, %s46, %s47
      %p51 = pneg %p45
      %p52 = scmp.eq.s32.totalorder %s22, 1
      %p53 = por %p51, %p52
      %p54 = scmp.ne.s32.totalorder %s46, %s49
      %p55 = scmp.eq.s32.totalorder %s22, 0
      %p56 = por %p54, %p55
      %p57 = scmp.ne.s32.totalorder %s46, %s49
      %p58 = scmp.eq.s32.totalorder %s27, 1
      %p59 = por %p57, %p58
      %p60 = scmp.ne.s32.totalorder %s49, %s50
      %p61 = scmp.eq.s32.totalorder %s27, 0
      %p62 = por %p60, %p61
      %p63 = scmp.ne.s32.totalorder %s49, %s50
      %p64 = scmp.eq.s32.totalorder %s28, 1
      %p65 = por %p63, %p64
      %p67 = scmp.ne.s32.totalorder %s50, %s66
      %p68 = scmp.eq.s32.totalorder %s28, 0
      %p69 = por %p67, %p68
      %s70 = ssub.s32 %s29, %s41
      %p71 = scmp.eq.s32.totalorder %s70, 0
      %s73 = sadd.s32 %s72, 1
      %s74 = scalar_select %p71, %s72, %s73
      %p77 = pneg %p71
      %p78 = scmp.eq.s32.totalorder %s22, 1
      %p79 = por %p77, %p78
      %p80 = scmp.ne.s32.totalorder %s72, %s75
      %p81 = scmp.eq.s32.totalorder %s22, 0
      %p82 = por %p80, %p81
      %p83 = scmp.ne.s32.totalorder %s72, %s75
      %p84 = scmp.eq.s32.totalorder %s27, 1
      %p85 = por %p83, %p84
      %p86 = scmp.ne.s32.totalorder %s75, %s76
      %p87 = scmp.eq.s32.totalorder %s27, 0
      %p88 = por %p86, %p87
      %p89 = scmp.ne.s32.totalorder %s75, %s76
      %p90 = scmp.eq.s32.totalorder %s28, 1
      %p91 = por %p89, %p90
      %p93 = scmp.ne.s32.totalorder %s76, %s92
      %p94 = scmp.eq.s32.totalorder %s28, 0
      %p95 = por %p93, %p94
      %s97 = sadd.s32 %s96, 1
      %p100 = scmp.eq.s32.totalorder %s22, 1
      %p101 = scmp.ne.s32.totalorder %s96, %s98
      %p102 = scmp.eq.s32.totalorder %s22, 0
      %p103 = por %p101, %p102
      %p104 = scmp.ne.s32.totalorder %s96, %s98
      %p105 = scmp.eq.s32.totalorder %s27, 1
      %p106 = por %p104, %p105
      %p107 = scmp.ne.s32.totalorder %s98, %s99
      %p108 = scmp.eq.s32.totalorder %s27, 0
      %p109 = por %p107, %p108
      %p110 = scmp.ne.s32.totalorder %s98, %s99
      %p111 = scmp.eq.s32.totalorder %s28, 1
      %p112 = por %p110, %p111
      %p114 = scmp.ne.s32.totalorder %s99, %s113
      %p115 = scmp.eq.s32.totalorder %s28, 0
      %p116 = por %p114, %p115
      %s118 = sadd.s32 %s117, 1
      %p121 = scmp.eq.s32.totalorder %s22, 1
      %p122 = scmp.ne.s32.totalorder %s117, %s119
      %p123 = scmp.eq.s32.totalorder %s22, 0
      %p124 = por %p122, %p123
      %p125 = scmp.ne.s32.totalorder %s117, %s119
      %p126 = scmp.eq.s32.totalorder %s27, 1
      %p127 = por %p125, %p126
      %p128 = scmp.ne.s32.totalorder %s119, %s120
      %p129 = scmp.eq.s32.totalorder %s27, 0
      %p130 = por %p128, %p129
      %p131 = scmp.ne.s32.totalorder %s119, %s120
      %p132 = scmp.eq.s32.totalorder %s28, 1
      %p133 = por %p131, %p132
      %p135 = scmp.ne.s32.totalorder %s120, %s134
      %p136 = scmp.eq.s32.totalorder %s28, 0
      %p137 = por %p135, %p136
      %s139 = sadd.s32 %s138, 1
      %p142 = scmp.eq.s32.totalorder %s22, 1
      %p143 = scmp.ne.s32.totalorder %s138, %s140
      %p144 = scmp.eq.s32.totalorder %s22, 0
      %p145 = por %p143, %p144
      %p146 = scmp.ne.s32.totalorder %s138, %s140
      %p147 = scmp.eq.s32.totalorder %s27, 1
      %p148 = por %p146, %p147
      %p149 = scmp.ne.s32.totalorder %s140, %s141
      %p150 = scmp.eq.s32.totalorder %s27, 0
      %p151 = por %p149, %p150
      %p152 = scmp.ne.s32.totalorder %s140, %s141
      %p153 = scmp.eq.s32.totalorder %s28, 1
      %p154 = por %p152, %p153
      %p156 = scmp.ne.s32.totalorder %s141, %s155
      %p157 = scmp.eq.s32.totalorder %s28, 0
      %p158 = por %p156, %p157
      %s159 = ssub.s32 %s30, %s37
      %s160 = ssub.s32 %s29, %s41
      %s161 = sor.u32 %s159, %s160
      %p162 = scmp.eq.s32.totalorder %s161, 0
      %s164 = sadd.s32 %s163, 1
      %s165 = scalar_select %p162, %s163, %s164
      %p168 = pneg %p162
      %p169 = scmp.eq.s32.totalorder %s22, 1
      %p170 = por %p168, %p169
      %p171 = scmp.ne.s32.totalorder %s163, %s166
      %p172 = scmp.eq.s32.totalorder %s22, 0
      %p173 = por %p171, %p172
      %p174 = scmp.ne.s32.totalorder %s163, %s166
      %p175 = scmp.eq.s32.totalorder %s27, 1
      %p176 = por %p174, %p175
      %p177 = scmp.ne.s32.totalorder %s166, %s167
      %p178 = scmp.eq.s32.totalorder %s27, 0
      %p179 = por %p177, %p178
      %p180 = scmp.ne.s32.totalorder %s166, %s167
      %p181 = scmp.eq.s32.totalorder %s28, 1
      %p182 = por %p180, %p181
      %p184 = scmp.ne.s32.totalorder %s167, %s183
      %p185 = scmp.eq.s32.totalorder %s28, 0
      %p186 = por %p184, %p185
      %p187 = scmp.le.s32.totalorder 1, %s22
      %p188 = scmp.lt.s32.totalorder %s22, 3
      %p189 = pnand %p187, %p188
      %p190 = pneg %p189
      // Predicated region
      $region9: #{tpu_custom_call.1} parent=5 // pred_check
        _
      $region10: #{tpu_custom_call.1} parent=5 // pred_check_branch
        %192 = sbr.rel (%p189) target = $region12
      $region11: #{tpu_custom_call.1} parent=5 // pred_region
        %s193 = ssub.s32 %s22, 1
        // Predicated region
        $region13: #{tpu_custom_call.1} parent=11 // pred_check
          %p194 = pneg %p88
        $region14: #{tpu_custom_call.1} parent=11 // pred_check_branch
          %196 = sbr.rel (%p194) target = $region16
        $region15: #{tpu_custom_call.1} parent=11 // pred_region
          %s197 = smul.u32 2, %s31
          %p198 = scmp.lt.s32.totalorder %s197, 3
          %s199 = scalar_select %p198, %s197, 3
          %s200 = smul.addr %s199, 8
          %s201 = scalar_lea.vmem %s3, %s200
          %s202 = smul.u32 2, %s31
        $region16: #{tpu_custom_call.1} parent=11 // pred_fallthru
          _
        // Predicated region
        $region17: #{tpu_custom_call.1} parent=11 // pred_check
          %p203 = pneg %p109
        $region18: #{tpu_custom_call.1} parent=11 // pred_check_branch
          %205 = sbr.rel (%p203) target = $region20
        $region19: #{tpu_custom_call.1} parent=11 // pred_region
          _
        $region20: #{tpu_custom_call.1} parent=11 // pred_fallthru
          _
        // Predicated region
        $region21: #{tpu_custom_call.1} parent=11 // pred_check
          %p206 = pneg %p130
        $region22: #{tpu_custom_call.1} parent=11 // pred_check_branch
          %208 = sbr.rel (%p206) target = $region24
        $region23: #{tpu_custom_call.1} parent=11 // pred_region
          _
        $region24: #{tpu_custom_call.1} parent=11 // pred_fallthru
          _
        // Predicated region
        $region25: #{tpu_custom_call.1} parent=11 // pred_check
          %p209 = pneg %p151
        $region26: #{tpu_custom_call.1} parent=11 // pred_check_branch
          %211 = sbr.rel (%p209) target = $region28
        $region27: #{tpu_custom_call.1} parent=11 // pred_region
          _
        $region28: #{tpu_custom_call.1} parent=11 // pred_fallthru
          _
      $region12: #{tpu_custom_call.1} parent=5 // pred_fallthru
        _
      %p212 = scmp.lt.s32.totalorder %s22, 2
      // Predicated region
      $region29: #{tpu_custom_call.1} parent=5 // pred_check
        %p213 = pneg %p212
      $region30: #{tpu_custom_call.1} parent=5 // pred_check_branch
        %215 = sbr.rel (%p213) target = $region32
      $region31: #{tpu_custom_call.1} parent=5 // pred_region
        // Predicated region
        $region33: #{tpu_custom_call.1} parent=31 // pred_check
          %p216 = pneg %p56
        $region34: #{tpu_custom_call.1} parent=31 // pred_check_branch
          %218 = sbr.rel (%p216) target = $region36
        $region35: #{tpu_custom_call.1} parent=31 // pred_region
          %s219 = smul.u32 2, %s29
          %p220 = scmp.lt.s32.totalorder %s30, 1
          %s221 = scalar_select %p220, %s30, 1
          %p222 = scmp.lt.s32.totalorder %s219, 1
          %s223 = scalar_select %p222, %s219, 1
          %s224 = smul.addr %s221, 2
          %s225 = sadd.s32 %s223, %s224
          %s226 = smul.addr %s225, 8
          %s227 = scalar_lea.vmem %s1, %s226
          %s228 = smul.u32 2, %s29
        $region36: #{tpu_custom_call.1} parent=31 // pred_fallthru
          _
      $region32: #{tpu_custom_call.1} parent=5 // pred_fallthru
        _
      %p229 = scmp.le.s32.totalorder 1, %s22
      %p230 = scmp.lt.s32.totalorder %s22, 3
      %p231 = pnand %p229, %p230
      %p232 = pneg %p231
      // Predicated region
      $region37: #{tpu_custom_call.1} parent=5 // pred_check
        _
      $region38: #{tpu_custom_call.1} parent=5 // pred_check_branch
        %234 = sbr.rel (%p231) target = $region40
      $region39: #{tpu_custom_call.1} parent=5 // pred_region
        %s235 = ssub.s32 %s22, 1
        %s236 = smul.u32 2, %s31
        %p237 = scmp.lt.s32.totalorder %s32, 1
        %s238 = scalar_select %p237, %s32, 1
        %p239 = scmp.lt.s32.totalorder %s236, 1
        %s240 = scalar_select %p239, %s236, 1
        %s241 = smul.addr %s238, 2
        %s242 = sadd.s32 %s240, %s241
        %s243 = smul.addr %s242, 8
        %s244 = scalar_lea.vmem %s1, %s243
        %p245 = pneg %p62
        %p246 = pneg %p59
        %s247 = smul.u32 2, %s31
        %p248 = scmp.lt.s32.totalorder %s247, 3
        %s249 = scalar_select %p248, %s247, 3
        %s250 = smul.addr %s249, 8
        %s251 = scalar_lea.vmem %s3, %s250
        %p252 = pneg %p88
        %p253 = pneg %p85
        %p254 = pneg %p109
        %p255 = pneg %p106
        %p256 = pneg %p130
        %p257 = pneg %p127
        %p258 = pneg %p151
        %p259 = pneg %p148
        %p260 = pneg %p179
        %p261 = pneg %p176
        %s262 = sand.u32 %s166, 1
        %s263 = scalar_lea.sflag [#allocation7], %s262
        %s264 = sand.u32 %s166, 1
        %s265 = smul.addr %s264, 16
        %s266 = scalar_lea.vmem [#allocation6], %s265
        %s267 = smul.u32 2, %s31
        %p268 = scmp.lt.s32.totalorder %s32, 1
        %s269 = scalar_select %p268, %s32, 1
        %p270 = scmp.lt.s32.totalorder %s267, 1
        %s271 = scalar_select %p270, %s267, 1
        %s272 = smul.addr %s269, 2
        %s273 = sadd.s32 %s271, %s272
        %s274 = smul.addr %s273, 8
        %s275 = scalar_lea.vmem %s1, %s274
        %s276 = smul.u32 2, %s31
        %s277 = smul.u32 2, %s31
        %p278 = scmp.lt.s32.totalorder %s277, 3
        %s279 = scalar_select %p278, %s277, 3
        %s280 = smul.addr %s279, 8
        %s281 = scalar_lea.vmem %s3, %s280
        %s282 = smul.u32 2, %s31
        %s283 = smul.u32 2, %s31
        %s284 = smul.u32 %s31, 16
        %v285 = vld [vmem:[%s275] sm:$0xff]
        %v286 = vld [vmem:[%s275 + $0x8] sm:$0xff]
        %s287 = sshra.s32 %s284, 7
        %s288 = sand.u32 %s284, 127
        %s289 = sadd.s32 %s287, %s32
        %s290 = smul.u32 %s289, 128
        %s291 = sshra.s32 %s284, 7
        %s292 = sand.u32 %s284, 127
        %s293 = sadd.s32 %s290, %s292
        %s294 = sld [smem:[#allocation5 + %s293]]
        %p295 = scmp.gt.s32.totalorder %s294, 0
        %s296 = scalar_select %p295, %s294, 0
        %p297 = scmp.lt.s32.totalorder %s296, 63
        %s298 = scalar_select %p297, %s296, 63
        %s299 = scalar_lea.vmem %s2, %s298
        %p301 = scmp.lt.u32.totalorder 1, 8
        %p302 = pneg %p301
        // Predicated region
        $region41: #{tpu_custom_call.1} parent=39 // pred_check
          _
        $region42: #{tpu_custom_call.1} parent=39 // pred_check_branch
          %304 = sbr.rel (%p301) target = $region44
        $region43: #{tpu_custom_call.1} parent=39 // pred_region
          %s320 = sand.u32 1, 7
          %p321 = scmp.eq.s32.totalorder %s320, 0
          %p322 = pneg %p321
          // Predicated region
          $region56: #{tpu_custom_call.1} parent=43 // pred_check
            _
          $region57: #{tpu_custom_call.1} parent=43 // pred_check_branch
            %324 = sbr.rel (%p321) target = $region59
          $region58: #{tpu_custom_call.1} parent=43 // pred_region
            %s325 = sand.u32 1, 7
            %s326 = ssub.s32 1, %s325
            %s327 = scalar_lea.vmem %s299, %s326
            %s328 = ssub.s32 1, %s325
            %s329 = scalar_lea.vmem [#allocation2], %s328
            %s330 = sshll.u32 1, %s325
            %s331 = ssub.s32 %s330, 1
            loop: start=0, step=1, limit=1
            $region60: #{tpu_custom_call.1} parent=58 // loop_pre_header
              _
            $region61: #{tpu_custom_call.1} parent=58 // loop_header
              %s333 = sphi 0, %s337
              %p334 = scmp.ge.s32.totalorder %s333, 1
              %s338 = sphi %s327, %s327
              %s339 = sphi %s329, %s329
            $region62: #{tpu_custom_call.1} parent=58 // loop_header_branch
              %336 = sbr.rel (%p334) target = $region66
            $region63: #{tpu_custom_call.1} parent=58 // loop_body
              %v340 = vld [vmem:[%s338] sm:%s331]
              %341 = vst [vmem:[%s339] sm:%s331] %v340
            $region64: #{tpu_custom_call.1} parent=58 // loop_footer
              %s337 = sadd.s32 1, %s333
            $region65: #{tpu_custom_call.1} parent=58 // loop_footer_branch
              %332 = sbr.rel target = $region61
            $region66: #{tpu_custom_call.1} parent=58 // loop_exit
              _
          $region59: #{tpu_custom_call.1} parent=43 // pred_fallthru
            _
        $region44: #{tpu_custom_call.1} parent=39 // pred_fallthru
          _
        // Predicated region
        $region45: #{tpu_custom_call.1} parent=39 // pred_check
          %p305 = pneg %p301
        $region46: #{tpu_custom_call.1} parent=39 // pred_check_branch
          %307 = sbr.rel (%p305) target = $region48
        $region47: #{tpu_custom_call.1} parent=39 // pred_region
          %s308 = sshll.u32 1, 1
          %s309 = ssub.s32 %s308, 1
          loop: start=0, step=1, limit=1
          $region49: #{tpu_custom_call.1} parent=47 // loop_pre_header
            _
          $region50: #{tpu_custom_call.1} parent=47 // loop_header
            %s311 = sphi 0, %s315
            %p312 = scmp.ge.s32.totalorder %s311, 1
            %s316 = sphi %s299, %s299
            %s317 = sphi [#allocation2], [#allocation2]
          $region51: #{tpu_custom_call.1} parent=47 // loop_header_branch
            %314 = sbr.rel (%p312) target = $region55
          $region52: #{tpu_custom_call.1} parent=47 // loop_body
            %v318 = vld [vmem:[%s316] sm:%s309]
            %319 = vst [vmem:[%s317] sm:%s309] %v318
          $region53: #{tpu_custom_call.1} parent=47 // loop_footer
            %s315 = sadd.s32 1, %s311
          $region54: #{tpu_custom_call.1} parent=47 // loop_footer_branch
            %310 = sbr.rel target = $region50
          $region55: #{tpu_custom_call.1} parent=47 // loop_exit
            _
        $region48: #{tpu_custom_call.1} parent=39 // pred_fallthru
          _
        // Predicated region
        $region67: #{tpu_custom_call.1} parent=39 // pred_check
          _
        $region68: #{tpu_custom_call.1} parent=39 // pred_check_branch
          %344 = sbr.rel (0) target = $region70
        $region69: #{tpu_custom_call.1} parent=39 // pred_region
          %345 = vsyncadd [#allocation3], 16
        $region70: #{tpu_custom_call.1} parent=39 // pred_fallthru
          _
        %s346 = sadd.s32 %s284, 1
        %s347 = sshra.s32 %s346, 7
        %s348 = sand.u32 %s346, 127
        %s349 = sadd.s32 %s347, %s32
        %s350 = smul.u32 %s349, 128
        %s351 = sshra.s32 %s346, 7
        %s352 = sand.u32 %s346, 127
        %s353 = sadd.s32 %s350, %s352
        %s354 = sld [smem:[#allocation5 + %s353]]
        %p355 = scmp.gt.s32.totalorder %s354, 0
        %s356 = scalar_select %p355, %s354, 0
        %p357 = scmp.lt.s32.totalorder %s356, 63
        %s358 = scalar_select %p357, %s356, 63
        %s359 = scalar_lea.vmem %s2, %s358
        %s360 = scalar_lea.vmem [#allocation2], 1
        %p362 = scmp.lt.u32.totalorder 1, 8
        %p363 = pneg %p362
        // Predicated region
        $region71: #{tpu_custom_call.1} parent=39 // pred_check
          _
        $region72: #{tpu_custom_call.1} parent=39 // pred_check_branch
          %365 = sbr.rel (%p362) target = $region74
        $region73: #{tpu_custom_call.1} parent=39 // pred_region
          %s381 = sand.u32 1, 7
          %p382 = scmp.eq.s32.totalorder %s381, 0
          %p383 = pneg %p382
          // Predicated region
          $region86: #{tpu_custom_call.1} parent=73 // pred_check
            _
          $region87: #{tpu_custom_call.1} parent=73 // pred_check_branch
            %385 = sbr.rel (%p382) target = $region89
          $region88: #{tpu_custom_call.1} parent=73 // pred_region
            %s386 = sand.u32 1, 7
            %s387 = ssub.s32 1, %s386
            %s388 = scalar_lea.vmem %s359, %s387
            %s389 = ssub.s32 1, %s386
            %s390 = scalar_lea.vmem %s360, %s389 [#allocation2]
            %s391 = sshll.u32 1, %s386
            %s392 = ssub.s32 %s391, 1
            loop: start=0, step=1, limit=1
            $region90: #{tpu_custom_call.1} parent=88 // loop_pre_header
              _
            $region91: #{tpu_custom_call.1} parent=88 // loop_header
              %s394 = sphi 0, %s398
              %p395 = scmp.ge.s32.totalorder %s394, 1
              %s399 = sphi %s388, %s388
              %s400 = sphi %s390, %s390
            $region92: #{tpu_custom_call.1} parent=88 // loop_header_branch
              %397 = sbr.rel (%p395) target = $region96
            $region93: #{tpu_custom_call.1} parent=88 // loop_body
              %v401 = vld [vmem:[%s399] sm:%s392]
              %402 = vst [vmem:[%s400] sm:%s392] %v401
            $region94: #{tpu_custom_call.1} parent=88 // loop_footer
              %s398 = sadd.s32 1, %s394
            $region95: #{tpu_custom_call.1} parent=88 // loop_footer_branch
              %393 = sbr.rel target = $region91
            $region96: #{tpu_custom_call.1} parent=88 // loop_exit
              _
          $region89: #{tpu_custom_call.1} parent=73 // pred_fallthru
            _
        $region74: #{tpu_custom_call.1} parent=39 // pred_fallthru
          _
        // Predicated region
        $region75: #{tpu_custom_call.1} parent=39 // pred_check
          %p366 = pneg %p362
        $region76: #{tpu_custom_call.1} parent=39 // pred_check_branch
          %368 = sbr.rel (%p366) target = $region78
        $region77: #{tpu_custom_call.1} parent=39 // pred_region
          %s369 = sshll.u32 1, 1
          %s370 = ssub.s32 %s369, 1
          loop: start=0, step=1, limit=1
          $region79: #{tpu_custom_call.1} parent=77 // loop_pre_header
            _
          $region80: #{tpu_custom_call.1} parent=77 // loop_header
            %s372 = sphi 0, %s376
            %p373 = scmp.ge.s32.totalorder %s372, 1
            %s377 = sphi %s359, %s359
            %s378 = sphi %s360, %s360
          $region81: #{tpu_custom_call.1} parent=77 // loop_header_branch
            %375 = sbr.rel (%p373) target = $region85
          $region82: #{tpu_custom_call.1} parent=77 // loop_body
            %v379 = vld [vmem:[%s377] sm:%s370]
            %380 = vst [vmem:[%s378] sm:%s370] %v379
          $region83: #{tpu_custom_call.1} parent=77 // loop_footer
            %s376 = sadd.s32 1, %s372
          $region84: #{tpu_custom_call.1} parent=77 // loop_footer_branch
            %371 = sbr.rel target = $region80
          $region85: #{tpu_custom_call.1} parent=77 // loop_exit
            _
        $region78: #{tpu_custom_call.1} parent=39 // pred_fallthru
          _
        // Predicated region
        $region97: #{tpu_custom_call.1} parent=39 // pred_check
          _
        $region98: #{tpu_custom_call.1} parent=39 // pred_check_branch
          %405 = sbr.rel (0) target = $region100
        $region99: #{tpu_custom_call.1} parent=39 // pred_region
          %406 = vsyncadd [#allocation3], 16
        $region100: #{tpu_custom_call.1} parent=39 // pred_fallthru
          _
        %s407 = sadd.s32 %s284, 2
        %s408 = sshra.s32 %s407, 7
        %s409 = sand.u32 %s407, 127
        %s410 = sadd.s32 %s408, %s32
        %s411 = smul.u32 %s410, 128
        %s412 = sshra.s32 %s407, 7
        %s413 = sand.u32 %s407, 127
        %s414 = sadd.s32 %s411, %s413
        %s415 = sld [smem:[#allocation5 + %s414]]
        %p416 = scmp.gt.s32.totalorder %s415, 0
        %s417 = scalar_select %p416, %s415, 0
        %p418 = scmp.lt.s32.totalorder %s417, 63
        %s419 = scalar_select %p418, %s417, 63
        %s420 = scalar_lea.vmem %s2, %s419
        %s421 = scalar_lea.vmem [#allocation2], 2
        %p423 = scmp.lt.u32.totalorder 1, 8
        %p424 = pneg %p423
        // Predicated region
        $region101: #{tpu_custom_call.1} parent=39 // pred_check
          _
        $region102: #{tpu_custom_call.1} parent=39 // pred_check_branch
          %426 = sbr.rel (%p423) target = $region104
        $region103: #{tpu_custom_call.1} parent=39 // pred_region
          %s442 = sand.u32 1, 7
          %p443 = scmp.eq.s32.totalorder %s442, 0
          %p444 = pneg %p443
          // Predicated region
          $region116: #{tpu_custom_call.1} parent=103 // pred_check
            _
          $region117: #{tpu_custom_call.1} parent=103 // pred_check_branch
            %446 = sbr.rel (%p443) target = $region119
          $region118: #{tpu_custom_call.1} parent=103 // pred_region
            %s447 = sand.u32 1, 7
            %s448 = ssub.s32 1, %s447
            %s449 = scalar_lea.vmem %s420, %s448
            %s450 = ssub.s32 1, %s447
            %s451 = scalar_lea.vmem %s421, %s450 [#allocation2]
            %s452 = sshll.u32 1, %s447
            %s453 = ssub.s32 %s452, 1
            loop: start=0, step=1, limit=1
            $region120: #{tpu_custom_call.1} parent=118 // loop_pre_header
              _
            $region121: #{tpu_custom_call.1} parent=118 // loop_header
              %s455 = sphi 0, %s459
              %p456 = scmp.ge.s32.totalorder %s455, 1
              %s460 = sphi %s449, %s449
              %s461 = sphi %s451, %s451
            $region122: #{tpu_custom_call.1} parent=118 // loop_header_branch
              %458 = sbr.rel (%p456) target = $region126
            $region123: #{tpu_custom_call.1} parent=118 // loop_body
              %v462 = vld [vmem:[%s460] sm:%s453]
              %463 = vst [vmem:[%s461] sm:%s453] %v462
            $region124: #{tpu_custom_call.1} parent=118 // loop_footer
              %s459 = sadd.s32 1, %s455
            $region125: #{tpu_custom_call.1} parent=118 // loop_footer_branch
              %454 = sbr.rel target = $region121
            $region126: #{tpu_custom_call.1} parent=118 // loop_exit
              _
          $region119: #{tpu_custom_call.1} parent=103 // pred_fallthru
            _
        $region104: #{tpu_custom_call.1} parent=39 // pred_fallthru
          _
        // Predicated region
        $region105: #{tpu_custom_call.1} parent=39 // pred_check
          %p427 = pneg %p423
        $region106: #{tpu_custom_call.1} parent=39 // pred_check_branch
          %429 = sbr.rel (%p427) target = $region108
        $region107: #{tpu_custom_call.1} parent=39 // pred_region
          %s430 = sshll.u32 1, 1
          %s431 = ssub.s32 %s430, 1
          loop: start=0, step=1, limit=1
          $region109: #{tpu_custom_call.1} parent=107 // loop_pre_header
            _
          $region110: #{tpu_custom_call.1} parent=107 // loop_header
            %s433 = sphi 0, %s437
            %p434 = scmp.ge.s32.totalorder %s433, 1
            %s438 = sphi %s420, %s420
            %s439 = sphi %s421, %s421
          $region111: #{tpu_custom_call.1} parent=107 // loop_header_branch
            %436 = sbr.rel (%p434) target = $region115
          $region112: #{tpu_custom_call.1} parent=107 // loop_body
            %v440 = vld [vmem:[%s438] sm:%s431]
            %441 = vst [vmem:[%s439] sm:%s431] %v440
          $region113: #{tpu_custom_call.1} parent=107 // loop_footer
            %s437 = sadd.s32 1, %s433
          $region114: #{tpu_custom_call.1} parent=107 // loop_footer_branch
            %432 = sbr.rel target = $region110
          $region115: #{tpu_custom_call.1} parent=107 // loop_exit
            _
        $region108: #{tpu_custom_call.1} parent=39 // pred_fallthru
          _
        // Predicated region
        $region127: #{tpu_custom_call.1} parent=39 // pred_check
          _
        $region128: #{tpu_custom_call.1} parent=39 // pred_check_branch
          %466 = sbr.rel (0) target = $region130
        $region129: #{tpu_custom_call.1} parent=39 // pred_region
          %467 = vsyncadd [#allocation3], 16
        $region130: #{tpu_custom_call.1} parent=39 // pred_fallthru
          _
        %s468 = sadd.s32 %s284, 3
        %s469 = sshra.s32 %s468, 7
        %s470 = sand.u32 %s468, 127
        %s471 = sadd.s32 %s469, %s32
        %s472 = smul.u32 %s471, 128
        %s473 = sshra.s32 %s468, 7
        %s474 = sand.u32 %s468, 127
        %s475 = sadd.s32 %s472, %s474
        %s476 = sld [smem:[#allocation5 + %s475]]
        %p477 = scmp.gt.s32.totalorder %s476, 0
        %s478 = scalar_select %p477, %s476, 0
        %p479 = scmp.lt.s32.totalorder %s478, 63
        %s480 = scalar_select %p479, %s478, 63
        %s481 = scalar_lea.vmem %s2, %s480
        %s482 = scalar_lea.vmem [#allocation2], 3
        %p484 = scmp.lt.u32.totalorder 1, 8
        %p485 = pneg %p484
        // Predicated region
        $region131: #{tpu_custom_call.1} parent=39 // pred_check
          _
        $region132: #{tpu_custom_call.1} parent=39 // pred_check_branch
          %487 = sbr.rel (%p484) target = $region134
        $region133: #{tpu_custom_call.1} parent=39 // pred_region
          %s503 = sand.u32 1, 7
          %p504 = scmp.eq.s32.totalorder %s503, 0
          %p505 = pneg %p504
          // Predicated region
          $region146: #{tpu_custom_call.1} parent=133 // pred_check
            _
          $region147: #{tpu_custom_call.1} parent=133 // pred_check_branch
            %507 = sbr.rel (%p504) target = $region149
          $region148: #{tpu_custom_call.1} parent=133 // pred_region
            %s508 = sand.u32 1, 7
            %s509 = ssub.s32 1, %s508
            %s510 = scalar_lea.vmem %s481, %s509
            %s511 = ssub.s32 1, %s508
            %s512 = scalar_lea.vmem %s482, %s511 [#allocation2]
            %s513 = sshll.u32 1, %s508
            %s514 = ssub.s32 %s513, 1
            loop: start=0, step=1, limit=1
            $region150: #{tpu_custom_call.1} parent=148 // loop_pre_header
              _
            $region151: #{tpu_custom_call.1} parent=148 // loop_header
              %s516 = sphi 0, %s520
              %p517 = scmp.ge.s32.totalorder %s516, 1
              %s521 = sphi %s510, %s510
              %s522 = sphi %s512, %s512
            $region152: #{tpu_custom_call.1} parent=148 // loop_header_branch
              %519 = sbr.rel (%p517) target = $region156
            $region153: #{tpu_custom_call.1} parent=148 // loop_body
              %v523 = vld [vmem:[%s521] sm:%s514]
              %524 = vst [vmem:[%s522] sm:%s514] %v523
            $region154: #{tpu_custom_call.1} parent=148 // loop_footer
              %s520 = sadd.s32 1, %s516
            $region155: #{tpu_custom_call.1} parent=148 // loop_footer_branch
              %515 = sbr.rel target = $region151
            $region156: #{tpu_custom_call.1} parent=148 // loop_exit
              _
          $region149: #{tpu_custom_call.1} parent=133 // pred_fallthru
            _
        $region134: #{tpu_custom_call.1} parent=39 // pred_fallthru
          _
        // Predicated region
        $region135: #{tpu_custom_call.1} parent=39 // pred_check
          %p488 = pneg %p484
        $region136: #{tpu_custom_call.1} parent=39 // pred_check_branch
          %490 = sbr.rel (%p488) target = $region138
        $region137: #{tpu_custom_call.1} parent=39 // pred_region
          %s491 = sshll.u32 1, 1
          %s492 = ssub.s32 %s491, 1
          loop: start=0, step=1, limit=1
          $region139: #{tpu_custom_call.1} parent=137 // loop_pre_header
            _
          $region140: #{tpu_custom_call.1} parent=137 // loop_header
            %s494 = sphi 0, %s498
            %p495 = scmp.ge.s32.totalorder %s494, 1
            %s499 = sphi %s481, %s481
            %s500 = sphi %s482, %s482
          $region141: #{tpu_custom_call.1} parent=137 // loop_header_branch
            %497 = sbr.rel (%p495) target = $region145
          $region142: #{tpu_custom_call.1} parent=137 // loop_body
            %v501 = vld [vmem:[%s499] sm:%s492]
            %502 = vst [vmem:[%s500] sm:%s492] %v501
          $region143: #{tpu_custom_call.1} parent=137 // loop_footer
            %s498 = sadd.s32 1, %s494
          $region144: #{tpu_custom_call.1} parent=137 // loop_footer_branch
            %493 = sbr.rel target = $region140
          $region145: #{tpu_custom_call.1} parent=137 // loop_exit
            _
        $region138: #{tpu_custom_call.1} parent=39 // pred_fallthru
          _
        // Predicated region
        $region157: #{tpu_custom_call.1} parent=39 // pred_check
          _
        $region158: #{tpu_custom_call.1} parent=39 // pred_check_branch
          %527 = sbr.rel (0) target = $region160
        $region159: #{tpu_custom_call.1} parent=39 // pred_region
          %528 = vsyncadd [#allocation3], 16
        $region160: #{tpu_custom_call.1} parent=39 // pred_fallthru
          _
        %s529 = sadd.s32 %s284, 4
        %s530 = sshra.s32 %s529, 7
        %s531 = sand.u32 %s529, 127
        %s532 = sadd.s32 %s530, %s32
        %s533 = smul.u32 %s532, 128
        %s534 = sshra.s32 %s529, 7
        %s535 = sand.u32 %s529, 127
        %s536 = sadd.s32 %s533, %s535
        %s537 = sld [smem:[#allocation5 + %s536]]
        %p538 = scmp.gt.s32.totalorder %s537, 0
        %s539 = scalar_select %p538, %s537, 0
        %p540 = scmp.lt.s32.totalorder %s539, 63
        %s541 = scalar_select %p540, %s539, 63
        %s542 = scalar_lea.vmem %s2, %s541
        %s543 = scalar_lea.vmem [#allocation2], 4
        %p545 = scmp.lt.u32.totalorder 1, 8
        %p546 = pneg %p545
        // Predicated region
        $region161: #{tpu_custom_call.1} parent=39 // pred_check
          _
        $region162: #{tpu_custom_call.1} parent=39 // pred_check_branch
          %548 = sbr.rel (%p545) target = $region164
        $region163: #{tpu_custom_call.1} parent=39 // pred_region
          %s564 = sand.u32 1, 7
          %p565 = scmp.eq.s32.totalorder %s564, 0
          %p566 = pneg %p565
          // Predicated region
          $region176: #{tpu_custom_call.1} parent=163 // pred_check
            _
          $region177: #{tpu_custom_call.1} parent=163 // pred_check_branch
            %568 = sbr.rel (%p565) target = $region179
          $region178: #{tpu_custom_call.1} parent=163 // pred_region
            %s569 = sand.u32 1, 7
            %s570 = ssub.s32 1, %s569
            %s571 = scalar_lea.vmem %s542, %s570
            %s572 = ssub.s32 1, %s569
            %s573 = scalar_lea.vmem %s543, %s572 [#allocation2]
            %s574 = sshll.u32 1, %s569
            %s575 = ssub.s32 %s574, 1
            loop: start=0, step=1, limit=1
            $region180: #{tpu_custom_call.1} parent=178 // loop_pre_header
              _
            $region181: #{tpu_custom_call.1} parent=178 // loop_header
              %s577 = sphi 0, %s581
              %p578 = scmp.ge.s32.totalorder %s577, 1
              %s582 = sphi %s571, %s571
              %s583 = sphi %s573, %s573
            $region182: #{tpu_custom_call.1} parent=178 // loop_header_branch
              %580 = sbr.rel (%p578) target = $region186
            $region183: #{tpu_custom_call.1} parent=178 // loop_body
              %v584 = vld [vmem:[%s582] sm:%s575]
              %585 = vst [vmem:[%s583] sm:%s575] %v584
            $region184: #{tpu_custom_call.1} parent=178 // loop_footer
              %s581 = sadd.s32 1, %s577
            $region185: #{tpu_custom_call.1} parent=178 // loop_footer_branch
              %576 = sbr.rel target = $region181
            $region186: #{tpu_custom_call.1} parent=178 // loop_exit
              _
          $region179: #{tpu_custom_call.1} parent=163 // pred_fallthru
            _
        $region164: #{tpu_custom_call.1} parent=39 // pred_fallthru
          _
        // Predicated region
        $region165: #{tpu_custom_call.1} parent=39 // pred_check
          %p549 = pneg %p545
        $region166: #{tpu_custom_call.1} parent=39 // pred_check_branch
          %551 = sbr.rel (%p549) target = $region168
        $region167: #{tpu_custom_call.1} parent=39 // pred_region
          %s552 = sshll.u32 1, 1
          %s553 = ssub.s32 %s552, 1
          loop: start=0, step=1, limit=1
          $region169: #{tpu_custom_call.1} parent=167 // loop_pre_header
            _
          $region170: #{tpu_custom_call.1} parent=167 // loop_header
            %s555 = sphi 0, %s559
            %p556 = scmp.ge.s32.totalorder %s555, 1
            %s560 = sphi %s542, %s542
            %s561 = sphi %s543, %s543
          $region171: #{tpu_custom_call.1} parent=167 // loop_header_branch
            %558 = sbr.rel (%p556) target = $region175
          $region172: #{tpu_custom_call.1} parent=167 // loop_body
            %v562 = vld [vmem:[%s560] sm:%s553]
            %563 = vst [vmem:[%s561] sm:%s553] %v562
          $region173: #{tpu_custom_call.1} parent=167 // loop_footer
            %s559 = sadd.s32 1, %s555
          $region174: #{tpu_custom_call.1} parent=167 // loop_footer_branch
            %554 = sbr.rel target = $region170
          $region175: #{tpu_custom_call.1} parent=167 // loop_exit
            _
        $region168: #{tpu_custom_call.1} parent=39 // pred_fallthru
          _
        // Predicated region
        $region187: #{tpu_custom_call.1} parent=39 // pred_check
          _
        $region188: #{tpu_custom_call.1} parent=39 // pred_check_branch
          %588 = sbr.rel (0) target = $region190
        $region189: #{tpu_custom_call.1} parent=39 // pred_region
          %589 = vsyncadd [#allocation3], 16
        $region190: #{tpu_custom_call.1} parent=39 // pred_fallthru
          _
        %s590 = sadd.s32 %s284, 5
        %s591 = sshra.s32 %s590, 7
        %s592 = sand.u32 %s590, 127
        %s593 = sadd.s32 %s591, %s32
        %s594 = smul.u32 %s593, 128
        %s595 = sshra.s32 %s590, 7
        %s596 = sand.u32 %s590, 127
        %s597 = sadd.s32 %s594, %s596
        %s598 = sld [smem:[#allocation5 + %s597]]
        %p599 = scmp.gt.s32.totalorder %s598, 0
        %s600 = scalar_select %p599, %s598, 0
        %p601 = scmp.lt.s32.totalorder %s600, 63
        %s602 = scalar_select %p601, %s600, 63
        %s603 = scalar_lea.vmem %s2, %s602
        %s604 = scalar_lea.vmem [#allocation2], 5
        %p606 = scmp.lt.u32.totalorder 1, 8
        %p607 = pneg %p606
        // Predicated region
        $region191: #{tpu_custom_call.1} parent=39 // pred_check
          _
        $region192: #{tpu_custom_call.1} parent=39 // pred_check_branch
          %609 = sbr.rel (%p606) target = $region194
        $region193: #{tpu_custom_call.1} parent=39 // pred_region
          %s625 = sand.u32 1, 7
          %p626 = scmp.eq.s32.totalorder %s625, 0
          %p627 = pneg %p626
          // Predicated region
          $region206: #{tpu_custom_call.1} parent=193 // pred_check
            _
          $region207: #{tpu_custom_call.1} parent=193 // pred_check_branch
            %629 = sbr.rel (%p626) target = $region209
          $region208: #{tpu_custom_call.1} parent=193 // pred_region
            %s630 = sand.u32 1, 7
            %s631 = ssub.s32 1, %s630
            %s632 = scalar_lea.vmem %s603, %s631
            %s633 = ssub.s32 1, %s630
            %s634 = scalar_lea.vmem %s604, %s633 [#allocation2]
            %s635 = sshll.u32 1, %s630
            %s636 = ssub.s32 %s635, 1
            loop: start=0, step=1, limit=1
            $region210: #{tpu_custom_call.1} parent=208 // loop_pre_header
              _
            $region211: #{tpu_custom_call.1} parent=208 // loop_header
              %s638 = sphi 0, %s642
              %p639 = scmp.ge.s32.totalorder %s638, 1
              %s643 = sphi %s632, %s632
              %s644 = sphi %s634, %s634
            $region212: #{tpu_custom_call.1} parent=208 // loop_header_branch
              %641 = sbr.rel (%p639) target = $region216
            $region213: #{tpu_custom_call.1} parent=208 // loop_body
              %v645 = vld [vmem:[%s643] sm:%s636]
              %646 = vst [vmem:[%s644] sm:%s636] %v645
            $region214: #{tpu_custom_call.1} parent=208 // loop_footer
              %s642 = sadd.s32 1, %s638
            $region215: #{tpu_custom_call.1} parent=208 // loop_footer_branch
              %637 = sbr.rel target = $region211
            $region216: #{tpu_custom_call.1} parent=208 // loop_exit
              _
          $region209: #{tpu_custom_call.1} parent=193 // pred_fallthru
            _
        $region194: #{tpu_custom_call.1} parent=39 // pred_fallthru
          _
        // Predicated region
        $region195: #{tpu_custom_call.1} parent=39 // pred_check
          %p610 = pneg %p606
        $region196: #{tpu_custom_call.1} parent=39 // pred_check_branch
          %612 = sbr.rel (%p610) target = $region198
        $region197: #{tpu_custom_call.1} parent=39 // pred_region
          %s613 = sshll.u32 1, 1
          %s614 = ssub.s32 %s613, 1
          loop: start=0, step=1, limit=1
          $region199: #{tpu_custom_call.1} parent=197 // loop_pre_header
            _
          $region200: #{tpu_custom_call.1} parent=197 // loop_header
            %s616 = sphi 0, %s620
            %p617 = scmp.ge.s32.totalorder %s616, 1
            %s621 = sphi %s603, %s603
            %s622 = sphi %s604, %s604
          $region201: #{tpu_custom_call.1} parent=197 // loop_header_branch
            %619 = sbr.rel (%p617) target = $region205
          $region202: #{tpu_custom_call.1} parent=197 // loop_body
            %v623 = vld [vmem:[%s621] sm:%s614]
            %624 = vst [vmem:[%s622] sm:%s614] %v623
          $region203: #{tpu_custom_call.1} parent=197 // loop_footer
            %s620 = sadd.s32 1, %s616
          $region204: #{tpu_custom_call.1} parent=197 // loop_footer_branch
            %615 = sbr.rel target = $region200
          $region205: #{tpu_custom_call.1} parent=197 // loop_exit
            _
        $region198: #{tpu_custom_call.1} parent=39 // pred_fallthru
          _
        // Predicated region
        $region217: #{tpu_custom_call.1} parent=39 // pred_check
          _
        $region218: #{tpu_custom_call.1} parent=39 // pred_check_branch
          %649 = sbr.rel (0) target = $region220
        $region219: #{tpu_custom_call.1} parent=39 // pred_region
          %650 = vsyncadd [#allocation3], 16
        $region220: #{tpu_custom_call.1} parent=39 // pred_fallthru
          _
        %s651 = sadd.s32 %s284, 6
        %s652 = sshra.s32 %s651, 7
        %s653 = sand.u32 %s651, 127
        %s654 = sadd.s32 %s652, %s32
        %s655 = smul.u32 %s654, 128
        %s656 = sshra.s32 %s651, 7
        %s657 = sand.u32 %s651, 127
        %s658 = sadd.s32 %s655, %s657
        %s659 = sld [smem:[#allocation5 + %s658]]
        %p660 = scmp.gt.s32.totalorder %s659, 0
        %s661 = scalar_select %p660, %s659, 0
        %p662 = scmp.lt.s32.totalorder %s661, 63
        %s663 = scalar_select %p662, %s661, 63
        %s664 = scalar_lea.vmem %s2, %s663
        %s665 = scalar_lea.vmem [#allocation2], 6
        %p667 = scmp.lt.u32.totalorder 1, 8
        %p668 = pneg %p667
        // Predicated region
        $region221: #{tpu_custom_call.1} parent=39 // pred_check
          _
        $region222: #{tpu_custom_call.1} parent=39 // pred_check_branch
          %670 = sbr.rel (%p667) target = $region224
        $region223: #{tpu_custom_call.1} parent=39 // pred_region
          %s686 = sand.u32 1, 7
          %p687 = scmp.eq.s32.totalorder %s686, 0
          %p688 = pneg %p687
          // Predicated region
          $region236: #{tpu_custom_call.1} parent=223 // pred_check
            _
          $region237: #{tpu_custom_call.1} parent=223 // pred_check_branch
            %690 = sbr.rel (%p687) target = $region239
          $region238: #{tpu_custom_call.1} parent=223 // pred_region
            %s691 = sand.u32 1, 7
            %s692 = ssub.s32 1, %s691
            %s693 = scalar_lea.vmem %s664, %s692
            %s694 = ssub.s32 1, %s691
            %s695 = scalar_lea.vmem %s665, %s694 [#allocation2]
            %s696 = sshll.u32 1, %s691
            %s697 = ssub.s32 %s696, 1
            loop: start=0, step=1, limit=1
            $region240: #{tpu_custom_call.1} parent=238 // loop_pre_header
              _
            $region241: #{tpu_custom_call.1} parent=238 // loop_header
              %s699 = sphi 0, %s703
              %p700 = scmp.ge.s32.totalorder %s699, 1
              %s704 = sphi %s693, %s693
              %s705 = sphi %s695, %s695
            $region242: #{tpu_custom_call.1} parent=238 // loop_header_branch
              %702 = sbr.rel (%p700) target = $region246
            $region243: #{tpu_custom_call.1} parent=238 // loop_body
              %v706 = vld [vmem:[%s704] sm:%s697]
              %707 = vst [vmem:[%s705] sm:%s697] %v706
            $region244: #{tpu_custom_call.1} parent=238 // loop_footer
              %s703 = sadd.s32 1, %s699
            $region245: #{tpu_custom_call.1} parent=238 // loop_footer_branch
              %698 = sbr.rel target = $region241
            $region246: #{tpu_custom_call.1} parent=238 // loop_exit
              _
          $region239: #{tpu_custom_call.1} parent=223 // pred_fallthru
            _
        $region224: #{tpu_custom_call.1} parent=39 // pred_fallthru
          _
        // Predicated region
        $region225: #{tpu_custom_call.1} parent=39 // pred_check
          %p671 = pneg %p667
        $region226: #{tpu_custom_call.1} parent=39 // pred_check_branch
          %673 = sbr.rel (%p671) target = $region228
        $region227: #{tpu_custom_call.1} parent=39 // pred_region
          %s674 = sshll.u32 1, 1
          %s675 = ssub.s32 %s674, 1
          loop: start=0, step=1, limit=1
          $region229: #{tpu_custom_call.1} parent=227 // loop_pre_header
            _
          $region230: #{tpu_custom_call.1} parent=227 // loop_header
            %s677 = sphi 0, %s681
            %p678 = scmp.ge.s32.totalorder %s677, 1
            %s682 = sphi %s664, %s664
            %s683 = sphi %s665, %s665
          $region231: #{tpu_custom_call.1} parent=227 // loop_header_branch
            %680 = sbr.rel (%p678) target = $region235
          $region232: #{tpu_custom_call.1} parent=227 // loop_body
            %v684 = vld [vmem:[%s682] sm:%s675]
            %685 = vst [vmem:[%s683] sm:%s675] %v684
          $region233: #{tpu_custom_call.1} parent=227 // loop_footer
            %s681 = sadd.s32 1, %s677
          $region234: #{tpu_custom_call.1} parent=227 // loop_footer_branch
            %676 = sbr.rel target = $region230
          $region235: #{tpu_custom_call.1} parent=227 // loop_exit
            _
        $region228: #{tpu_custom_call.1} parent=39 // pred_fallthru
          _
        // Predicated region
        $region247: #{tpu_custom_call.1} parent=39 // pred_check
          _
        $region248: #{tpu_custom_call.1} parent=39 // pred_check_branch
          %710 = sbr.rel (0) target = $region250
        $region249: #{tpu_custom_call.1} parent=39 // pred_region
          %711 = vsyncadd [#allocation3], 16
        $region250: #{tpu_custom_call.1} parent=39 // pred_fallthru
          _
        %s712 = sadd.s32 %s284, 7
        %s713 = sshra.s32 %s712, 7
        %s714 = sand.u32 %s712, 127
        %s715 = sadd.s32 %s713, %s32
        %s716 = smul.u32 %s715, 128
        %s717 = sshra.s32 %s712, 7
        %s718 = sand.u32 %s712, 127
        %s719 = sadd.s32 %s716, %s718
        %s720 = sld [smem:[#allocation5 + %s719]]
        %p721 = scmp.gt.s32.totalorder %s720, 0
        %s722 = scalar_select %p721, %s720, 0
        %p723 = scmp.lt.s32.totalorder %s722, 63
        %s724 = scalar_select %p723, %s722, 63
        %s725 = scalar_lea.vmem %s2, %s724
        %s726 = scalar_lea.vmem [#allocation2], 7
        %p728 = scmp.lt.u32.totalorder 1, 8
        %p729 = pneg %p728
        // Predicated region
        $region251: #{tpu_custom_call.1} parent=39 // pred_check
          _
        $region252: #{tpu_custom_call.1} parent=39 // pred_check_branch
          %731 = sbr.rel (%p728) target = $region254
        $region253: #{tpu_custom_call.1} parent=39 // pred_region
          %s747 = sand.u32 1, 7
          %p748 = scmp.eq.s32.totalorder %s747, 0
          %p749 = pneg %p748
          // Predicated region
          $region266: #{tpu_custom_call.1} parent=253 // pred_check
            _
          $region267: #{tpu_custom_call.1} parent=253 // pred_check_branch
            %751 = sbr.rel (%p748) target = $region269
          $region268: #{tpu_custom_call.1} parent=253 // pred_region
            %s752 = sand.u32 1, 7
            %s753 = ssub.s32 1, %s752
            %s754 = scalar_lea.vmem %s725, %s753
            %s755 = ssub.s32 1, %s752
            %s756 = scalar_lea.vmem %s726, %s755 [#allocation2]
            %s757 = sshll.u32 1, %s752
            %s758 = ssub.s32 %s757, 1
            loop: start=0, step=1, limit=1
            $region270: #{tpu_custom_call.1} parent=268 // loop_pre_header
              _
            $region271: #{tpu_custom_call.1} parent=268 // loop_header
              %s760 = sphi 0, %s764
              %p761 = scmp.ge.s32.totalorder %s760, 1
              %s765 = sphi %s754, %s754
              %s766 = sphi %s756, %s756
            $region272: #{tpu_custom_call.1} parent=268 // loop_header_branch
              %763 = sbr.rel (%p761) target = $region276
            $region273: #{tpu_custom_call.1} parent=268 // loop_body
              %v767 = vld [vmem:[%s765] sm:%s758]
              %768 = vst [vmem:[%s766] sm:%s758] %v767
            $region274: #{tpu_custom_call.1} parent=268 // loop_footer
              %s764 = sadd.s32 1, %s760
            $region275: #{tpu_custom_call.1} parent=268 // loop_footer_branch
              %759 = sbr.rel target = $region271
            $region276: #{tpu_custom_call.1} parent=268 // loop_exit
              _
          $region269: #{tpu_custom_call.1} parent=253 // pred_fallthru
            _
        $region254: #{tpu_custom_call.1} parent=39 // pred_fallthru
          _
        // Predicated region
        $region255: #{tpu_custom_call.1} parent=39 // pred_check
          %p732 = pneg %p728
        $region256: #{tpu_custom_call.1} parent=39 // pred_check_branch
          %734 = sbr.rel (%p732) target = $region258
        $region257: #{tpu_custom_call.1} parent=39 // pred_region
          %s735 = sshll.u32 1, 1
          %s736 = ssub.s32 %s735, 1
          loop: start=0, step=1, limit=1
          $region259: #{tpu_custom_call.1} parent=257 // loop_pre_header
            _
          $region260: #{tpu_custom_call.1} parent=257 // loop_header
            %s738 = sphi 0, %s742
            %p739 = scmp.ge.s32.totalorder %s738, 1
            %s743 = sphi %s725, %s725
            %s744 = sphi %s726, %s726
          $region261: #{tpu_custom_call.1} parent=257 // loop_header_branch
            %741 = sbr.rel (%p739) target = $region265
          $region262: #{tpu_custom_call.1} parent=257 // loop_body
            %v745 = vld [vmem:[%s743] sm:%s736]
            %746 = vst [vmem:[%s744] sm:%s736] %v745
          $region263: #{tpu_custom_call.1} parent=257 // loop_footer
            %s742 = sadd.s32 1, %s738
          $region264: #{tpu_custom_call.1} parent=257 // loop_footer_branch
            %737 = sbr.rel target = $region260
          $region265: #{tpu_custom_call.1} parent=257 // loop_exit
            _
        $region258: #{tpu_custom_call.1} parent=39 // pred_fallthru
          _
        // Predicated region
        $region277: #{tpu_custom_call.1} parent=39 // pred_check
          _
        $region278: #{tpu_custom_call.1} parent=39 // pred_check_branch
          %771 = sbr.rel (0) target = $region280
        $region279: #{tpu_custom_call.1} parent=39 // pred_region
          %772 = vsyncadd [#allocation3], 16
        $region280: #{tpu_custom_call.1} parent=39 // pred_fallthru
          _
        %s773 = sadd.s32 %s284, 8
        %s774 = sshra.s32 %s773, 7
        %s775 = sand.u32 %s773, 127
        %s776 = sadd.s32 %s774, %s32
        %s777 = smul.u32 %s776, 128
        %s778 = sshra.s32 %s773, 7
        %s779 = sand.u32 %s773, 127
        %s780 = sadd.s32 %s777, %s779
        %s781 = sld [smem:[#allocation5 + %s780]]
        %p782 = scmp.gt.s32.totalorder %s781, 0
        %s783 = scalar_select %p782, %s781, 0
        %p784 = scmp.lt.s32.totalorder %s783, 63
        %s785 = scalar_select %p784, %s783, 63
        %s786 = scalar_lea.vmem %s2, %s785
        %s787 = scalar_lea.vmem [#allocation2], 8
        %s788 = scalar_lea.sflag [#allocation3], 1
        %p790 = scmp.lt.u32.totalorder 1, 8
        %p791 = pneg %p790
        // Predicated region
        $region281: #{tpu_custom_call.1} parent=39 // pred_check
          _
        $region282: #{tpu_custom_call.1} parent=39 // pred_check_branch
          %793 = sbr.rel (%p790) target = $region284
        $region283: #{tpu_custom_call.1} parent=39 // pred_region
          %s809 = sand.u32 1, 7
          %p810 = scmp.eq.s32.totalorder %s809, 0
          %p811 = pneg %p810
          // Predicated region
          $region296: #{tpu_custom_call.1} parent=283 // pred_check
            _
          $region297: #{tpu_custom_call.1} parent=283 // pred_check_branch
            %813 = sbr.rel (%p810) target = $region299
          $region298: #{tpu_custom_call.1} parent=283 // pred_region
            %s814 = sand.u32 1, 7
            %s815 = ssub.s32 1, %s814
            %s816 = scalar_lea.vmem %s786, %s815
            %s817 = ssub.s32 1, %s814
            %s818 = scalar_lea.vmem %s787, %s817 [#allocation2]
            %s819 = sshll.u32 1, %s814
            %s820 = ssub.s32 %s819, 1
            loop: start=0, step=1, limit=1
            $region300: #{tpu_custom_call.1} parent=298 // loop_pre_header
              _
            $region301: #{tpu_custom_call.1} parent=298 // loop_header
              %s822 = sphi 0, %s826
              %p823 = scmp.ge.s32.totalorder %s822, 1
              %s827 = sphi %s816, %s816
              %s828 = sphi %s818, %s818
            $region302: #{tpu_custom_call.1} parent=298 // loop_header_branch
              %825 = sbr.rel (%p823) target = $region306
            $region303: #{tpu_custom_call.1} parent=298 // loop_body
              %v829 = vld [vmem:[%s827] sm:%s820]
              %830 = vst [vmem:[%s828] sm:%s820] %v829
            $region304: #{tpu_custom_call.1} parent=298 // loop_footer
              %s826 = sadd.s32 1, %s822
            $region305: #{tpu_custom_call.1} parent=298 // loop_footer_branch
              %821 = sbr.rel target = $region301
            $region306: #{tpu_custom_call.1} parent=298 // loop_exit
              _
          $region299: #{tpu_custom_call.1} parent=283 // pred_fallthru
            _
        $region284: #{tpu_custom_call.1} parent=39 // pred_fallthru
          _
        // Predicated region
        $region285: #{tpu_custom_call.1} parent=39 // pred_check
          %p794 = pneg %p790
        $region286: #{tpu_custom_call.1} parent=39 // pred_check_branch
          %796 = sbr.rel (%p794) target = $region288
        $region287: #{tpu_custom_call.1} parent=39 // pred_region
          %s797 = sshll.u32 1, 1
          %s798 = ssub.s32 %s797, 1
          loop: start=0, step=1, limit=1
          $region289: #{tpu_custom_call.1} parent=287 // loop_pre_header
            _
          $region290: #{tpu_custom_call.1} parent=287 // loop_header
            %s800 = sphi 0, %s804
            %p801 = scmp.ge.s32.totalorder %s800, 1
            %s805 = sphi %s786, %s786
            %s806 = sphi %s787, %s787
          $region291: #{tpu_custom_call.1} parent=287 // loop_header_branch
            %803 = sbr.rel (%p801) target = $region295
          $region292: #{tpu_custom_call.1} parent=287 // loop_body
            %v807 = vld [vmem:[%s805] sm:%s798]
            %808 = vst [vmem:[%s806] sm:%s798] %v807
          $region293: #{tpu_custom_call.1} parent=287 // loop_footer
            %s804 = sadd.s32 1, %s800
          $region294: #{tpu_custom_call.1} parent=287 // loop_footer_branch
            %799 = sbr.rel target = $region290
          $region295: #{tpu_custom_call.1} parent=287 // loop_exit
            _
        $region288: #{tpu_custom_call.1} parent=39 // pred_fallthru
          _
        // Predicated region
        $region307: #{tpu_custom_call.1} parent=39 // pred_check
          _
        $region308: #{tpu_custom_call.1} parent=39 // pred_check_branch
          %833 = sbr.rel (0) target = $region310
        $region309: #{tpu_custom_call.1} parent=39 // pred_region
          %834 = vsyncadd %s788, 16
        $region310: #{tpu_custom_call.1} parent=39 // pred_fallthru
          _
        %s835 = sadd.s32 %s284, 9
        %s836 = sshra.s32 %s835, 7
        %s837 = sand.u32 %s835, 127
        %s838 = sadd.s32 %s836, %s32
        %s839 = smul.u32 %s838, 128
        %s840 = sshra.s32 %s835, 7
        %s841 = sand.u32 %s835, 127
        %s842 = sadd.s32 %s839, %s841
        %s843 = sld [smem:[#allocation5 + %s842]]
        %p844 = scmp.gt.s32.totalorder %s843, 0
        %s845 = scalar_select %p844, %s843, 0
        %p846 = scmp.lt.s32.totalorder %s845, 63
        %s847 = scalar_select %p846, %s845, 63
        %s848 = scalar_lea.vmem %s2, %s847
        %s849 = scalar_lea.vmem [#allocation2], 9
        %p851 = scmp.lt.u32.totalorder 1, 8
        %p852 = pneg %p851
        // Predicated region
        $region311: #{tpu_custom_call.1} parent=39 // pred_check
          _
        $region312: #{tpu_custom_call.1} parent=39 // pred_check_branch
          %854 = sbr.rel (%p851) target = $region314
        $region313: #{tpu_custom_call.1} parent=39 // pred_region
          %s870 = sand.u32 1, 7
          %p871 = scmp.eq.s32.totalorder %s870, 0
          %p872 = pneg %p871
          // Predicated region
          $region326: #{tpu_custom_call.1} parent=313 // pred_check
            _
          $region327: #{tpu_custom_call.1} parent=313 // pred_check_branch
            %874 = sbr.rel (%p871) target = $region329
          $region328: #{tpu_custom_call.1} parent=313 // pred_region
            %s875 = sand.u32 1, 7
            %s876 = ssub.s32 1, %s875
            %s877 = scalar_lea.vmem %s848, %s876
            %s878 = ssub.s32 1, %s875
            %s879 = scalar_lea.vmem %s849, %s878 [#allocation2]
            %s880 = sshll.u32 1, %s875
            %s881 = ssub.s32 %s880, 1
            loop: start=0, step=1, limit=1
            $region330: #{tpu_custom_call.1} parent=328 // loop_pre_header
              _
            $region331: #{tpu_custom_call.1} parent=328 // loop_header
              %s883 = sphi 0, %s887
              %p884 = scmp.ge.s32.totalorder %s883, 1
              %s888 = sphi %s877, %s877
              %s889 = sphi %s879, %s879
            $region332: #{tpu_custom_call.1} parent=328 // loop_header_branch
              %886 = sbr.rel (%p884) target = $region336
            $region333: #{tpu_custom_call.1} parent=328 // loop_body
              %v890 = vld [vmem:[%s888] sm:%s881]
              %891 = vst [vmem:[%s889] sm:%s881] %v890
            $region334: #{tpu_custom_call.1} parent=328 // loop_footer
              %s887 = sadd.s32 1, %s883
            $region335: #{tpu_custom_call.1} parent=328 // loop_footer_branch
              %882 = sbr.rel target = $region331
            $region336: #{tpu_custom_call.1} parent=328 // loop_exit
              _
          $region329: #{tpu_custom_call.1} parent=313 // pred_fallthru
            _
        $region314: #{tpu_custom_call.1} parent=39 // pred_fallthru
          _
        // Predicated region
        $region315: #{tpu_custom_call.1} parent=39 // pred_check
          %p855 = pneg %p851
        $region316: #{tpu_custom_call.1} parent=39 // pred_check_branch
          %857 = sbr.rel (%p855) target = $region318
        $region317: #{tpu_custom_call.1} parent=39 // pred_region
          %s858 = sshll.u32 1, 1
          %s859 = ssub.s32 %s858, 1
          loop: start=0, step=1, limit=1
          $region319: #{tpu_custom_call.1} parent=317 // loop_pre_header
            _
          $region320: #{tpu_custom_call.1} parent=317 // loop_header
            %s861 = sphi 0, %s865
            %p862 = scmp.ge.s32.totalorder %s861, 1
            %s866 = sphi %s848, %s848
            %s867 = sphi %s849, %s849
          $region321: #{tpu_custom_call.1} parent=317 // loop_header_branch
            %864 = sbr.rel (%p862) target = $region325
          $region322: #{tpu_custom_call.1} parent=317 // loop_body
            %v868 = vld [vmem:[%s866] sm:%s859]
            %869 = vst [vmem:[%s867] sm:%s859] %v868
          $region323: #{tpu_custom_call.1} parent=317 // loop_footer
            %s865 = sadd.s32 1, %s861
          $region324: #{tpu_custom_call.1} parent=317 // loop_footer_branch
            %860 = sbr.rel target = $region320
          $region325: #{tpu_custom_call.1} parent=317 // loop_exit
            _
        $region318: #{tpu_custom_call.1} parent=39 // pred_fallthru
          _
        // Predicated region
        $region337: #{tpu_custom_call.1} parent=39 // pred_check
          _
        $region338: #{tpu_custom_call.1} parent=39 // pred_check_branch
          %894 = sbr.rel (0) target = $region340
        $region339: #{tpu_custom_call.1} parent=39 // pred_region
          %895 = vsyncadd %s788, 16
        $region340: #{tpu_custom_call.1} parent=39 // pred_fallthru
          _
        %s896 = sadd.s32 %s284, 10
        %s897 = sshra.s32 %s896, 7
        %s898 = sand.u32 %s896, 127
        %s899 = sadd.s32 %s897, %s32
        %s900 = smul.u32 %s899, 128
        %s901 = sshra.s32 %s896, 7
        %s902 = sand.u32 %s896, 127
        %s903 = sadd.s32 %s900, %s902
        %s904 = sld [smem:[#allocation5 + %s903]]
        %p905 = scmp.gt.s32.totalorder %s904, 0
        %s906 = scalar_select %p905, %s904, 0
        %p907 = scmp.lt.s32.totalorder %s906, 63
        %s908 = scalar_select %p907, %s906, 63
        %s909 = scalar_lea.vmem %s2, %s908
        %s910 = scalar_lea.vmem [#allocation2], 10
        %p912 = scmp.lt.u32.totalorder 1, 8
        %p913 = pneg %p912
        // Predicated region
        $region341: #{tpu_custom_call.1} parent=39 // pred_check
          _
        $region342: #{tpu_custom_call.1} parent=39 // pred_check_branch
          %915 = sbr.rel (%p912) target = $region344
        $region343: #{tpu_custom_call.1} parent=39 // pred_region
          %s931 = sand.u32 1, 7
          %p932 = scmp.eq.s32.totalorder %s931, 0
          %p933 = pneg %p932
          // Predicated region
          $region356: #{tpu_custom_call.1} parent=343 // pred_check
            _
          $region357: #{tpu_custom_call.1} parent=343 // pred_check_branch
            %935 = sbr.rel (%p932) target = $region359
          $region358: #{tpu_custom_call.1} parent=343 // pred_region
            %s936 = sand.u32 1, 7
            %s937 = ssub.s32 1, %s936
            %s938 = scalar_lea.vmem %s909, %s937
            %s939 = ssub.s32 1, %s936
            %s940 = scalar_lea.vmem %s910, %s939 [#allocation2]
            %s941 = sshll.u32 1, %s936
            %s942 = ssub.s32 %s941, 1
            loop: start=0, step=1, limit=1
            $region360: #{tpu_custom_call.1} parent=358 // loop_pre_header
              _
            $region361: #{tpu_custom_call.1} parent=358 // loop_header
              %s944 = sphi 0, %s948
              %p945 = scmp.ge.s32.totalorder %s944, 1
              %s949 = sphi %s938, %s938
              %s950 = sphi %s940, %s940
            $region362: #{tpu_custom_call.1} parent=358 // loop_header_branch
              %947 = sbr.rel (%p945) target = $region366
            $region363: #{tpu_custom_call.1} parent=358 // loop_body
              %v951 = vld [vmem:[%s949] sm:%s942]
              %952 = vst [vmem:[%s950] sm:%s942] %v951
            $region364: #{tpu_custom_call.1} parent=358 // loop_footer
              %s948 = sadd.s32 1, %s944
            $region365: #{tpu_custom_call.1} parent=358 // loop_footer_branch
              %943 = sbr.rel target = $region361
            $region366: #{tpu_custom_call.1} parent=358 // loop_exit
              _
          $region359: #{tpu_custom_call.1} parent=343 // pred_fallthru
            _
        $region344: #{tpu_custom_call.1} parent=39 // pred_fallthru
          _
        // Predicated region
        $region345: #{tpu_custom_call.1} parent=39 // pred_check
          %p916 = pneg %p912
        $region346: #{tpu_custom_call.1} parent=39 // pred_check_branch
          %918 = sbr.rel (%p916) target = $region348
        $region347: #{tpu_custom_call.1} parent=39 // pred_region
          %s919 = sshll.u32 1, 1
          %s920 = ssub.s32 %s919, 1
          loop: start=0, step=1, limit=1
          $region349: #{tpu_custom_call.1} parent=347 // loop_pre_header
            _
          $region350: #{tpu_custom_call.1} parent=347 // loop_header
            %s922 = sphi 0, %s926
            %p923 = scmp.ge.s32.totalorder %s922, 1
            %s927 = sphi %s909, %s909
            %s928 = sphi %s910, %s910
          $region351: #{tpu_custom_call.1} parent=347 // loop_header_branch
            %925 = sbr.rel (%p923) target = $region355
          $region352: #{tpu_custom_call.1} parent=347 // loop_body
            %v929 = vld [vmem:[%s927] sm:%s920]
            %930 = vst [vmem:[%s928] sm:%s920] %v929
          $region353: #{tpu_custom_call.1} parent=347 // loop_footer
            %s926 = sadd.s32 1, %s922
          $region354: #{tpu_custom_call.1} parent=347 // loop_footer_branch
            %921 = sbr.rel target = $region350
          $region355: #{tpu_custom_call.1} parent=347 // loop_exit
            _
        $region348: #{tpu_custom_call.1} parent=39 // pred_fallthru
          _
        // Predicated region
        $region367: #{tpu_custom_call.1} parent=39 // pred_check
          _
        $region368: #{tpu_custom_call.1} parent=39 // pred_check_branch
          %955 = sbr.rel (0) target = $region370
        $region369: #{tpu_custom_call.1} parent=39 // pred_region
          %956 = vsyncadd %s788, 16
        $region370: #{tpu_custom_call.1} parent=39 // pred_fallthru
          _
        %s957 = sadd.s32 %s284, 11
        %s958 = sshra.s32 %s957, 7
        %s959 = sand.u32 %s957, 127
        %s960 = sadd.s32 %s958, %s32
        %s961 = smul.u32 %s960, 128
        %s962 = sshra.s32 %s957, 7
        %s963 = sand.u32 %s957, 127
        %s964 = sadd.s32 %s961, %s963
        %s965 = sld [smem:[#allocation5 + %s964]]
        %p966 = scmp.gt.s32.totalorder %s965, 0
        %s967 = scalar_select %p966, %s965, 0
        %p968 = scmp.lt.s32.totalorder %s967, 63
        %s969 = scalar_select %p968, %s967, 63
        %s970 = scalar_lea.vmem %s2, %s969
        %s971 = scalar_lea.vmem [#allocation2], 11
        %p973 = scmp.lt.u32.totalorder 1, 8
        %p974 = pneg %p973
        // Predicated region
        $region371: #{tpu_custom_call.1} parent=39 // pred_check
          _
        $region372: #{tpu_custom_call.1} parent=39 // pred_check_branch
          %976 = sbr.rel (%p973) target = $region374
        $region373: #{tpu_custom_call.1} parent=39 // pred_region
          %s992 = sand.u32 1, 7
          %p993 = scmp.eq.s32.totalorder %s992, 0
          %p994 = pneg %p993
          // Predicated region
          $region386: #{tpu_custom_call.1} parent=373 // pred_check
            _
          $region387: #{tpu_custom_call.1} parent=373 // pred_check_branch
            %996 = sbr.rel (%p993) target = $region389
          $region388: #{tpu_custom_call.1} parent=373 // pred_region
            %s997 = sand.u32 1, 7
            %s998 = ssub.s32 1, %s997
            %s999 = scalar_lea.vmem %s970, %s998
            %s1000 = ssub.s32 1, %s997
            %s1001 = scalar_lea.vmem %s971, %s1000 [#allocation2]
            %s1002 = sshll.u32 1, %s997
            %s1003 = ssub.s32 %s1002, 1
            loop: start=0, step=1, limit=1
            $region390: #{tpu_custom_call.1} parent=388 // loop_pre_header
              _
            $region391: #{tpu_custom_call.1} parent=388 // loop_header
              %s1005 = sphi 0, %s1009
              %p1006 = scmp.ge.s32.totalorder %s1005, 1
              %s1010 = sphi %s999, %s999
              %s1011 = sphi %s1001, %s1001
            $region392: #{tpu_custom_call.1} parent=388 // loop_header_branch
              %1008 = sbr.rel (%p1006) target = $region396
            $region393: #{tpu_custom_call.1} parent=388 // loop_body
              %v1012 = vld [vmem:[%s1010] sm:%s1003]
              %1013 = vst [vmem:[%s1011] sm:%s1003] %v1012
            $region394: #{tpu_custom_call.1} parent=388 // loop_footer
              %s1009 = sadd.s32 1, %s1005
            $region395: #{tpu_custom_call.1} parent=388 // loop_footer_branch
              %1004 = sbr.rel target = $region391
            $region396: #{tpu_custom_call.1} parent=388 // loop_exit
              _
          $region389: #{tpu_custom_call.1} parent=373 // pred_fallthru
            _
        $region374: #{tpu_custom_call.1} parent=39 // pred_fallthru
          _
        // Predicated region
        $region375: #{tpu_custom_call.1} parent=39 // pred_check
          %p977 = pneg %p973
        $region376: #{tpu_custom_call.1} parent=39 // pred_check_branch
          %979 = sbr.rel (%p977) target = $region378
        $region377: #{tpu_custom_call.1} parent=39 // pred_region
          %s980 = sshll.u32 1, 1
          %s981 = ssub.s32 %s980, 1
          loop: start=0, step=1, limit=1
          $region379: #{tpu_custom_call.1} parent=377 // loop_pre_header
            _
          $region380: #{tpu_custom_call.1} parent=377 // loop_header
            %s983 = sphi 0, %s987
            %p984 = scmp.ge.s32.totalorder %s983, 1
            %s988 = sphi %s970, %s970
            %s989 = sphi %s971, %s971
          $region381: #{tpu_custom_call.1} parent=377 // loop_header_branch
            %986 = sbr.rel (%p984) target = $region385
          $region382: #{tpu_custom_call.1} parent=377 // loop_body
            %v990 = vld [vmem:[%s988] sm:%s981]
            %991 = vst [vmem:[%s989] sm:%s981] %v990
          $region383: #{tpu_custom_call.1} parent=377 // loop_footer
            %s987 = sadd.s32 1, %s983
          $region384: #{tpu_custom_call.1} parent=377 // loop_footer_branch
            %982 = sbr.rel target = $region380
          $region385: #{tpu_custom_call.1} parent=377 // loop_exit
            _
        $region378: #{tpu_custom_call.1} parent=39 // pred_fallthru
          _
        // Predicated region
        $region397: #{tpu_custom_call.1} parent=39 // pred_check
          _
        $region398: #{tpu_custom_call.1} parent=39 // pred_check_branch
          %1016 = sbr.rel (0) target = $region400
        $region399: #{tpu_custom_call.1} parent=39 // pred_region
          %1017 = vsyncadd %s788, 16
        $region400: #{tpu_custom_call.1} parent=39 // pred_fallthru
          _
        %s1018 = sadd.s32 %s284, 12
        %s1019 = sshra.s32 %s1018, 7
        %s1020 = sand.u32 %s1018, 127
        %s1021 = sadd.s32 %s1019, %s32
        %s1022 = smul.u32 %s1021, 128
        %s1023 = sshra.s32 %s1018, 7
        %s1024 = sand.u32 %s1018, 127
        %s1025 = sadd.s32 %s1022, %s1024
        %s1026 = sld [smem:[#allocation5 + %s1025]]
        %p1027 = scmp.gt.s32.totalorder %s1026, 0
        %s1028 = scalar_select %p1027, %s1026, 0
        %p1029 = scmp.lt.s32.totalorder %s1028, 63
        %s1030 = scalar_select %p1029, %s1028, 63
        %s1031 = scalar_lea.vmem %s2, %s1030
        %s1032 = scalar_lea.vmem [#allocation2], 12
        %p1034 = scmp.lt.u32.totalorder 1, 8
        %p1035 = pneg %p1034
        // Predicated region
        $region401: #{tpu_custom_call.1} parent=39 // pred_check
          _
        $region402: #{tpu_custom_call.1} parent=39 // pred_check_branch
          %1037 = sbr.rel (%p1034) target = $region404
        $region403: #{tpu_custom_call.1} parent=39 // pred_region
          %s1053 = sand.u32 1, 7
          %p1054 = scmp.eq.s32.totalorder %s1053, 0
          %p1055 = pneg %p1054
          // Predicated region
          $region416: #{tpu_custom_call.1} parent=403 // pred_check
            _
          $region417: #{tpu_custom_call.1} parent=403 // pred_check_branch
            %1057 = sbr.rel (%p1054) target = $region419
          $region418: #{tpu_custom_call.1} parent=403 // pred_region
            %s1058 = sand.u32 1, 7
            %s1059 = ssub.s32 1, %s1058
            %s1060 = scalar_lea.vmem %s1031, %s1059
            %s1061 = ssub.s32 1, %s1058
            %s1062 = scalar_lea.vmem %s1032, %s1061 [#allocation2]
            %s1063 = sshll.u32 1, %s1058
            %s1064 = ssub.s32 %s1063, 1
            loop: start=0, step=1, limit=1
            $region420: #{tpu_custom_call.1} parent=418 // loop_pre_header
              _
            $region421: #{tpu_custom_call.1} parent=418 // loop_header
              %s1066 = sphi 0, %s1070
              %p1067 = scmp.ge.s32.totalorder %s1066, 1
              %s1071 = sphi %s1060, %s1060
              %s1072 = sphi %s1062, %s1062
            $region422: #{tpu_custom_call.1} parent=418 // loop_header_branch
              %1069 = sbr.rel (%p1067) target = $region426
            $region423: #{tpu_custom_call.1} parent=418 // loop_body
              %v1073 = vld [vmem:[%s1071] sm:%s1064]
              %1074 = vst [vmem:[%s1072] sm:%s1064] %v1073
            $region424: #{tpu_custom_call.1} parent=418 // loop_footer
              %s1070 = sadd.s32 1, %s1066
            $region425: #{tpu_custom_call.1} parent=418 // loop_footer_branch
              %1065 = sbr.rel target = $region421
            $region426: #{tpu_custom_call.1} parent=418 // loop_exit
              _
          $region419: #{tpu_custom_call.1} parent=403 // pred_fallthru
            _
        $region404: #{tpu_custom_call.1} parent=39 // pred_fallthru
          _
        // Predicated region
        $region405: #{tpu_custom_call.1} parent=39 // pred_check
          %p1038 = pneg %p1034
        $region406: #{tpu_custom_call.1} parent=39 // pred_check_branch
          %1040 = sbr.rel (%p1038) target = $region408
        $region407: #{tpu_custom_call.1} parent=39 // pred_region
          %s1041 = sshll.u32 1, 1
          %s1042 = ssub.s32 %s1041, 1
          loop: start=0, step=1, limit=1
          $region409: #{tpu_custom_call.1} parent=407 // loop_pre_header
            _
          $region410: #{tpu_custom_call.1} parent=407 // loop_header
            %s1044 = sphi 0, %s1048
            %p1045 = scmp.ge.s32.totalorder %s1044, 1
            %s1049 = sphi %s1031, %s1031
            %s1050 = sphi %s1032, %s1032
          $region411: #{tpu_custom_call.1} parent=407 // loop_header_branch
            %1047 = sbr.rel (%p1045) target = $region415
          $region412: #{tpu_custom_call.1} parent=407 // loop_body
            %v1051 = vld [vmem:[%s1049] sm:%s1042]
            %1052 = vst [vmem:[%s1050] sm:%s1042] %v1051
          $region413: #{tpu_custom_call.1} parent=407 // loop_footer
            %s1048 = sadd.s32 1, %s1044
          $region414: #{tpu_custom_call.1} parent=407 // loop_footer_branch
            %1043 = sbr.rel target = $region410
          $region415: #{tpu_custom_call.1} parent=407 // loop_exit
            _
        $region408: #{tpu_custom_call.1} parent=39 // pred_fallthru
          _
        // Predicated region
        $region427: #{tpu_custom_call.1} parent=39 // pred_check
          _
        $region428: #{tpu_custom_call.1} parent=39 // pred_check_branch
          %1077 = sbr.rel (0) target = $region430
        $region429: #{tpu_custom_call.1} parent=39 // pred_region
          %1078 = vsyncadd %s788, 16
        $region430: #{tpu_custom_call.1} parent=39 // pred_fallthru
          _
        %s1079 = sadd.s32 %s284, 13
        %s1080 = sshra.s32 %s1079, 7
        %s1081 = sand.u32 %s1079, 127
        %s1082 = sadd.s32 %s1080, %s32
        %s1083 = smul.u32 %s1082, 128
        %s1084 = sshra.s32 %s1079, 7
        %s1085 = sand.u32 %s1079, 127
        %s1086 = sadd.s32 %s1083, %s1085
        %s1087 = sld [smem:[#allocation5 + %s1086]]
        %p1088 = scmp.gt.s32.totalorder %s1087, 0
        %s1089 = scalar_select %p1088, %s1087, 0
        %p1090 = scmp.lt.s32.totalorder %s1089, 63
        %s1091 = scalar_select %p1090, %s1089, 63
        %s1092 = scalar_lea.vmem %s2, %s1091
        %s1093 = scalar_lea.vmem [#allocation2], 13
        %p1095 = scmp.lt.u32.totalorder 1, 8
        %p1096 = pneg %p1095
        // Predicated region
        $region431: #{tpu_custom_call.1} parent=39 // pred_check
          _
        $region432: #{tpu_custom_call.1} parent=39 // pred_check_branch
          %1098 = sbr.rel (%p1095) target = $region434
        $region433: #{tpu_custom_call.1} parent=39 // pred_region
          %s1114 = sand.u32 1, 7
          %p1115 = scmp.eq.s32.totalorder %s1114, 0
          %p1116 = pneg %p1115
          // Predicated region
          $region446: #{tpu_custom_call.1} parent=433 // pred_check
            _
          $region447: #{tpu_custom_call.1} parent=433 // pred_check_branch
            %1118 = sbr.rel (%p1115) target = $region449
          $region448: #{tpu_custom_call.1} parent=433 // pred_region
            %s1119 = sand.u32 1, 7
            %s1120 = ssub.s32 1, %s1119
            %s1121 = scalar_lea.vmem %s1092, %s1120
            %s1122 = ssub.s32 1, %s1119
            %s1123 = scalar_lea.vmem %s1093, %s1122 [#allocation2]
            %s1124 = sshll.u32 1, %s1119
            %s1125 = ssub.s32 %s1124, 1
            loop: start=0, step=1, limit=1
            $region450: #{tpu_custom_call.1} parent=448 // loop_pre_header
              _
            $region451: #{tpu_custom_call.1} parent=448 // loop_header
              %s1127 = sphi 0, %s1131
              %p1128 = scmp.ge.s32.totalorder %s1127, 1
              %s1132 = sphi %s1121, %s1121
              %s1133 = sphi %s1123, %s1123
            $region452: #{tpu_custom_call.1} parent=448 // loop_header_branch
              %1130 = sbr.rel (%p1128) target = $region456
            $region453: #{tpu_custom_call.1} parent=448 // loop_body
              %v1134 = vld [vmem:[%s1132] sm:%s1125]
              %1135 = vst [vmem:[%s1133] sm:%s1125] %v1134
            $region454: #{tpu_custom_call.1} parent=448 // loop_footer
              %s1131 = sadd.s32 1, %s1127
            $region455: #{tpu_custom_call.1} parent=448 // loop_footer_branch
              %1126 = sbr.rel target = $region451
            $region456: #{tpu_custom_call.1} parent=448 // loop_exit
              _
          $region449: #{tpu_custom_call.1} parent=433 // pred_fallthru
            _
        $region434: #{tpu_custom_call.1} parent=39 // pred_fallthru
          _
        // Predicated region
        $region435: #{tpu_custom_call.1} parent=39 // pred_check
          %p1099 = pneg %p1095
        $region436: #{tpu_custom_call.1} parent=39 // pred_check_branch
          %1101 = sbr.rel (%p1099) target = $region438
        $region437: #{tpu_custom_call.1} parent=39 // pred_region
          %s1102 = sshll.u32 1, 1
          %s1103 = ssub.s32 %s1102, 1
          loop: start=0, step=1, limit=1
          $region439: #{tpu_custom_call.1} parent=437 // loop_pre_header
            _
          $region440: #{tpu_custom_call.1} parent=437 // loop_header
            %s1105 = sphi 0, %s1109
            %p1106 = scmp.ge.s32.totalorder %s1105, 1
            %s1110 = sphi %s1092, %s1092
            %s1111 = sphi %s1093, %s1093
          $region441: #{tpu_custom_call.1} parent=437 // loop_header_branch
            %1108 = sbr.rel (%p1106) target = $region445
          $region442: #{tpu_custom_call.1} parent=437 // loop_body
            %v1112 = vld [vmem:[%s1110] sm:%s1103]
            %1113 = vst [vmem:[%s1111] sm:%s1103] %v1112
          $region443: #{tpu_custom_call.1} parent=437 // loop_footer
            %s1109 = sadd.s32 1, %s1105
          $region444: #{tpu_custom_call.1} parent=437 // loop_footer_branch
            %1104 = sbr.rel target = $region440
          $region445: #{tpu_custom_call.1} parent=437 // loop_exit
            _
        $region438: #{tpu_custom_call.1} parent=39 // pred_fallthru
          _
        // Predicated region
        $region457: #{tpu_custom_call.1} parent=39 // pred_check
          _
        $region458: #{tpu_custom_call.1} parent=39 // pred_check_branch
          %1138 = sbr.rel (0) target = $region460
        $region459: #{tpu_custom_call.1} parent=39 // pred_region
          %1139 = vsyncadd %s788, 16
        $region460: #{tpu_custom_call.1} parent=39 // pred_fallthru
          _
        %s1140 = sadd.s32 %s284, 14
        %s1141 = sshra.s32 %s1140, 7
        %s1142 = sand.u32 %s1140, 127
        %s1143 = sadd.s32 %s1141, %s32
        %s1144 = smul.u32 %s1143, 128
        %s1145 = sshra.s32 %s1140, 7
        %s1146 = sand.u32 %s1140, 127
        %s1147 = sadd.s32 %s1144, %s1146
        %s1148 = sld [smem:[#allocation5 + %s1147]]
        %p1149 = scmp.gt.s32.totalorder %s1148, 0
        %s1150 = scalar_select %p1149, %s1148, 0
        %p1151 = scmp.lt.s32.totalorder %s1150, 63
        %s1152 = scalar_select %p1151, %s1150, 63
        %s1153 = scalar_lea.vmem %s2, %s1152
        %s1154 = scalar_lea.vmem [#allocation2], 14
        %p1156 = scmp.lt.u32.totalorder 1, 8
        %p1157 = pneg %p1156
        // Predicated region
        $region461: #{tpu_custom_call.1} parent=39 // pred_check
          _
        $region462: #{tpu_custom_call.1} parent=39 // pred_check_branch
          %1159 = sbr.rel (%p1156) target = $region464
        $region463: #{tpu_custom_call.1} parent=39 // pred_region
          %s1175 = sand.u32 1, 7
          %p1176 = scmp.eq.s32.totalorder %s1175, 0
          %p1177 = pneg %p1176
          // Predicated region
          $region476: #{tpu_custom_call.1} parent=463 // pred_check
            _
          $region477: #{tpu_custom_call.1} parent=463 // pred_check_branch
            %1179 = sbr.rel (%p1176) target = $region479
          $region478: #{tpu_custom_call.1} parent=463 // pred_region
            %s1180 = sand.u32 1, 7
            %s1181 = ssub.s32 1, %s1180
            %s1182 = scalar_lea.vmem %s1153, %s1181
            %s1183 = ssub.s32 1, %s1180
            %s1184 = scalar_lea.vmem %s1154, %s1183 [#allocation2]
            %s1185 = sshll.u32 1, %s1180
            %s1186 = ssub.s32 %s1185, 1
            loop: start=0, step=1, limit=1
            $region480: #{tpu_custom_call.1} parent=478 // loop_pre_header
              _
            $region481: #{tpu_custom_call.1} parent=478 // loop_header
              %s1188 = sphi 0, %s1192
              %p1189 = scmp.ge.s32.totalorder %s1188, 1
              %s1193 = sphi %s1182, %s1182
              %s1194 = sphi %s1184, %s1184
            $region482: #{tpu_custom_call.1} parent=478 // loop_header_branch
              %1191 = sbr.rel (%p1189) target = $region486
            $region483: #{tpu_custom_call.1} parent=478 // loop_body
              %v1195 = vld [vmem:[%s1193] sm:%s1186]
              %1196 = vst [vmem:[%s1194] sm:%s1186] %v1195
            $region484: #{tpu_custom_call.1} parent=478 // loop_footer
              %s1192 = sadd.s32 1, %s1188
            $region485: #{tpu_custom_call.1} parent=478 // loop_footer_branch
              %1187 = sbr.rel target = $region481
            $region486: #{tpu_custom_call.1} parent=478 // loop_exit
              _
          $region479: #{tpu_custom_call.1} parent=463 // pred_fallthru
            _
        $region464: #{tpu_custom_call.1} parent=39 // pred_fallthru
          _
        // Predicated region
        $region465: #{tpu_custom_call.1} parent=39 // pred_check
          %p1160 = pneg %p1156
        $region466: #{tpu_custom_call.1} parent=39 // pred_check_branch
          %1162 = sbr.rel (%p1160) target = $region468
        $region467: #{tpu_custom_call.1} parent=39 // pred_region
          %s1163 = sshll.u32 1, 1
          %s1164 = ssub.s32 %s1163, 1
          loop: start=0, step=1, limit=1
          $region469: #{tpu_custom_call.1} parent=467 // loop_pre_header
            _
          $region470: #{tpu_custom_call.1} parent=467 // loop_header
            %s1166 = sphi 0, %s1170
            %p1167 = scmp.ge.s32.totalorder %s1166, 1
            %s1171 = sphi %s1153, %s1153
            %s1172 = sphi %s1154, %s1154
          $region471: #{tpu_custom_call.1} parent=467 // loop_header_branch
            %1169 = sbr.rel (%p1167) target = $region475
          $region472: #{tpu_custom_call.1} parent=467 // loop_body
            %v1173 = vld [vmem:[%s1171] sm:%s1164]
            %1174 = vst [vmem:[%s1172] sm:%s1164] %v1173
          $region473: #{tpu_custom_call.1} parent=467 // loop_footer
            %s1170 = sadd.s32 1, %s1166
          $region474: #{tpu_custom_call.1} parent=467 // loop_footer_branch
            %1165 = sbr.rel target = $region470
          $region475: #{tpu_custom_call.1} parent=467 // loop_exit
            _
        $region468: #{tpu_custom_call.1} parent=39 // pred_fallthru
          _
        // Predicated region
        $region487: #{tpu_custom_call.1} parent=39 // pred_check
          _
        $region488: #{tpu_custom_call.1} parent=39 // pred_check_branch
          %1199 = sbr.rel (0) target = $region490
        $region489: #{tpu_custom_call.1} parent=39 // pred_region
          %1200 = vsyncadd %s788, 16
        $region490: #{tpu_custom_call.1} parent=39 // pred_fallthru
          _
        %s1201 = sadd.s32 %s284, 15
        %s1202 = sshra.s32 %s1201, 7
        %s1203 = sand.u32 %s1201, 127
        %s1204 = sadd.s32 %s1202, %s32
        %s1205 = smul.u32 %s1204, 128
        %s1206 = sshra.s32 %s1201, 7
        %s1207 = sand.u32 %s1201, 127
        %s1208 = sadd.s32 %s1205, %s1207
        %s1209 = sld [smem:[#allocation5 + %s1208]]
        %p1210 = scmp.gt.s32.totalorder %s1209, 0
        %s1211 = scalar_select %p1210, %s1209, 0
        %p1212 = scmp.lt.s32.totalorder %s1211, 63
        %s1213 = scalar_select %p1212, %s1211, 63
        %s1214 = scalar_lea.vmem %s2, %s1213
        %s1215 = scalar_lea.vmem [#allocation2], 15
        %p1217 = scmp.lt.u32.totalorder 1, 8
        %p1218 = pneg %p1217
        // Predicated region
        $region491: #{tpu_custom_call.1} parent=39 // pred_check
          _
        $region492: #{tpu_custom_call.1} parent=39 // pred_check_branch
          %1220 = sbr.rel (%p1217) target = $region494
        $region493: #{tpu_custom_call.1} parent=39 // pred_region
          %s1236 = sand.u32 1, 7
          %p1237 = scmp.eq.s32.totalorder %s1236, 0
          %p1238 = pneg %p1237
          // Predicated region
          $region506: #{tpu_custom_call.1} parent=493 // pred_check
            _
          $region507: #{tpu_custom_call.1} parent=493 // pred_check_branch
            %1240 = sbr.rel (%p1237) target = $region509
          $region508: #{tpu_custom_call.1} parent=493 // pred_region
            %s1241 = sand.u32 1, 7
            %s1242 = ssub.s32 1, %s1241
            %s1243 = scalar_lea.vmem %s1214, %s1242
            %s1244 = ssub.s32 1, %s1241
            %s1245 = scalar_lea.vmem %s1215, %s1244 [#allocation2]
            %s1246 = sshll.u32 1, %s1241
            %s1247 = ssub.s32 %s1246, 1
            loop: start=0, step=1, limit=1
            $region510: #{tpu_custom_call.1} parent=508 // loop_pre_header
              _
            $region511: #{tpu_custom_call.1} parent=508 // loop_header
              %s1249 = sphi 0, %s1253
              %p1250 = scmp.ge.s32.totalorder %s1249, 1
              %s1254 = sphi %s1243, %s1243
              %s1255 = sphi %s1245, %s1245
            $region512: #{tpu_custom_call.1} parent=508 // loop_header_branch
              %1252 = sbr.rel (%p1250) target = $region516
            $region513: #{tpu_custom_call.1} parent=508 // loop_body
              %v1256 = vld [vmem:[%s1254] sm:%s1247]
              %1257 = vst [vmem:[%s1255] sm:%s1247] %v1256
            $region514: #{tpu_custom_call.1} parent=508 // loop_footer
              %s1253 = sadd.s32 1, %s1249
            $region515: #{tpu_custom_call.1} parent=508 // loop_footer_branch
              %1248 = sbr.rel target = $region511
            $region516: #{tpu_custom_call.1} parent=508 // loop_exit
              _
          $region509: #{tpu_custom_call.1} parent=493 // pred_fallthru
            _
        $region494: #{tpu_custom_call.1} parent=39 // pred_fallthru
          _
        // Predicated region
        $region495: #{tpu_custom_call.1} parent=39 // pred_check
          %p1221 = pneg %p1217
        $region496: #{tpu_custom_call.1} parent=39 // pred_check_branch
          %1223 = sbr.rel (%p1221) target = $region498
        $region497: #{tpu_custom_call.1} parent=39 // pred_region
          %s1224 = sshll.u32 1, 1
          %s1225 = ssub.s32 %s1224, 1
          loop: start=0, step=1, limit=1
          $region499: #{tpu_custom_call.1} parent=497 // loop_pre_header
            _
          $region500: #{tpu_custom_call.1} parent=497 // loop_header
            %s1227 = sphi 0, %s1231
            %p1228 = scmp.ge.s32.totalorder %s1227, 1
            %s1232 = sphi %s1214, %s1214
            %s1233 = sphi %s1215, %s1215
          $region501: #{tpu_custom_call.1} parent=497 // loop_header_branch
            %1230 = sbr.rel (%p1228) target = $region505
          $region502: #{tpu_custom_call.1} parent=497 // loop_body
            %v1234 = vld [vmem:[%s1232] sm:%s1225]
            %1235 = vst [vmem:[%s1233] sm:%s1225] %v1234
          $region503: #{tpu_custom_call.1} parent=497 // loop_footer
            %s1231 = sadd.s32 1, %s1227
          $region504: #{tpu_custom_call.1} parent=497 // loop_footer_branch
            %1226 = sbr.rel target = $region500
          $region505: #{tpu_custom_call.1} parent=497 // loop_exit
            _
        $region498: #{tpu_custom_call.1} parent=39 // pred_fallthru
          _
        // Predicated region
        $region517: #{tpu_custom_call.1} parent=39 // pred_check
          _
        $region518: #{tpu_custom_call.1} parent=39 // pred_check_branch
          %1260 = sbr.rel (0) target = $region520
        $region519: #{tpu_custom_call.1} parent=39 // pred_region
          %1261 = vsyncadd %s788, 16
        $region520: #{tpu_custom_call.1} parent=39 // pred_fallthru
          _
        %v1262 = vld [vmem:[%s281] sm:$0xff]
        %vm1263 = vcmp.eq.s32.totalorder %v285, 0
        %v1264 = vsel %vm1263, 1, 0
        %v1265 = vcvt.s32.f32 %v1264
        %v1266 = vld [vmem:[%s4] sm:$0x1]
        %1268 = vset.pattern.permute.xlu0 0
        %1269 = vperm.xlu0 %1268, %v1265
        %v1270 = vpop.permute.xlu0 %1269
        %v1272 = vlaneseq
        %v1273 = vshrl.u32 %v1272, 7
        %v1274 = vsub.s32 0, %v1273
        %v1275 = vrot.slane %v1266, %v1274
        %v1276 = vmul.f32 %v1270, %v1275
        %v1277 = vadd.f32 %v1262, %v1276
        %vm1278 = vcmp.eq.s32.totalorder %v285, 1
        %v1279 = vsel %vm1278, 1, 0
        %v1280 = vcvt.s32.f32 %v1279
        %v1281 = vld [vmem:[%s4 + $0x1] sm:$0x1]
        %1283 = vset.pattern.permute.xlu0 0
        %1284 = vperm.xlu0 %1283, %v1280
        %v1285 = vpop.permute.xlu0 %1284
        %v1287 = vlaneseq
        %v1288 = vshrl.u32 %v1287, 7
        %v1289 = vsub.s32 0, %v1288
        %v1290 = vrot.slane %v1281, %v1289
        %v1291 = vmul.f32 %v1285, %v1290
        %v1292 = vadd.f32 %v1277, %v1291
        %s1293 = smul.u32 8, 1
        %s1294 = sshll.u32 %s1293, 4
        %1295 = dma.done [#allocation3], %s1294
        %v1296 = vld [vmem:[#allocation2] sm:$0xff]
        %v1297 = vadd.f32 %v1296, %v1292
        %vm1298 = vcmask 261120
        %v1299 = vsel %vm1298, %v1297, 0.0
        %1300 = vadd.xlane.f32.xlu0 %v1299
        %v1301 = vpop.xlane.xlu0 %1300
        %v1302 = vrcp.pop 32.0
        %v1303 = vmul.f32 %v1301, %v1302
        %v1304 = vsub.f32 %v1297, %v1303
        %v1305 = vmul.f32 %v1304, %v1304
        %v1306 = vsel %vm1298, %v1305, 0.0
        %1307 = vadd.xlane.f32.xlu0 %v1306
        %v1308 = vpop.xlane.xlu0 %1307
        %v1309 = vmul.f32 %v1308, %v1302
        %v1310 = vadd.f32 %v1309, 1e-12
        %v1311 = vrsqrt.pop %v1310
        %v1312 = vmul.f32 %v1304, %v1311
        %v1313 = vld [vmem:[%s5] sm:$0x1]
        %v1315 = vlaneseq
        %v1316 = vshrl.u32 %v1315, 7
        %v1317 = vsub.s32 0, %v1316
        %v1318 = vrot.slane %v1313, %v1317
        %v1320 = vmul.f32 %v1312, %v1318
        %v1321 = vld [vmem:[%s6] sm:$0x1]
        %v1323 = vlaneseq
        %v1324 = vshrl.u32 %v1323, 7
        %v1325 = vsub.s32 0, %v1324
        %v1326 = vrot.slane %v1321, %v1325
        %v1328 = vadd.f32 %v1320, %v1326
        %1329 = vst.msk [vmem:[%s266] sm:$0xff] %vm1298, %v1328
        %v1330 = vld [vmem:[%s281 + $0x8] sm:$0xff]
        %vm1331 = vcmp.eq.s32.totalorder %v286, 0
        %v1332 = vsel %vm1331, 1, 0
        %v1333 = vcvt.s32.f32 %v1332
        %v1334 = vld [vmem:[%s4] sm:$0x1]
        %1336 = vset.pattern.permute.xlu0 0
        %1337 = vperm.xlu0 %1336, %v1333
        %v1338 = vpop.permute.xlu0 %1337
        %v1340 = vlaneseq
        %v1341 = vshrl.u32 %v1340, 7
        %v1342 = vsub.s32 0, %v1341
        %v1343 = vrot.slane %v1334, %v1342
        %v1344 = vmul.f32 %v1338, %v1343
        %v1345 = vadd.f32 %v1330, %v1344
        %vm1346 = vcmp.eq.s32.totalorder %v286, 1
        %v1347 = vsel %vm1346, 1, 0
        %v1348 = vcvt.s32.f32 %v1347
        %v1349 = vld [vmem:[%s4 + $0x1] sm:$0x1]
        %1351 = vset.pattern.permute.xlu0 0
        %1352 = vperm.xlu0 %1351, %v1348
        %v1353 = vpop.permute.xlu0 %1352
        %v1355 = vlaneseq
        %v1356 = vshrl.u32 %v1355, 7
        %v1357 = vsub.s32 0, %v1356
        %v1358 = vrot.slane %v1349, %v1357
        %v1359 = vmul.f32 %v1353, %v1358
        %v1360 = vadd.f32 %v1345, %v1359
        %s1361 = sshll.u32 %s1293, 4
        %1362 = dma.done %s788, %s1361
        %v1363 = vld [vmem:[#allocation2 + $0x8] sm:$0xff]
        %v1364 = vadd.f32 %v1363, %v1360
        %v1365 = vsel %vm1298, %v1364, 0.0
        %1366 = vadd.xlane.f32.xlu0 %v1365
        %v1367 = vpop.xlane.xlu0 %1366
        %v1368 = vmul.f32 %v1367, %v1302
        %v1369 = vsub.f32 %v1364, %v1368
        %v1370 = vmul.f32 %v1369, %v1369
        %v1371 = vsel %vm1298, %v1370, 0.0
        %1372 = vadd.xlane.f32.xlu0 %v1371
        %v1373 = vpop.xlane.xlu0 %1372
        %v1374 = vmul.f32 %v1373, %v1302
        %v1375 = vadd.f32 %v1374, 1e-12
        %v1376 = vrsqrt.pop %v1375
        %v1377 = vmul.f32 %v1369, %v1376
        %v1378 = vld [vmem:[%s5] sm:$0x1]
        %v1380 = vlaneseq
        %v1381 = vshrl.u32 %v1380, 7
        %v1382 = vsub.s32 0, %v1381
        %v1383 = vrot.slane %v1378, %v1382
        %v1385 = vmul.f32 %v1377, %v1383
        %v1386 = vld [vmem:[%s6] sm:$0x1]
        %v1388 = vlaneseq
        %v1389 = vshrl.u32 %v1388, 7
        %v1390 = vsub.s32 0, %v1389
        %v1391 = vrot.slane %v1386, %v1390
        %v1393 = vadd.f32 %v1385, %v1391
        %1394 = vst.msk [vmem:[%s266 + $0x8] sm:$0xff] %vm1298, %v1393
        %s1395 = sand.u32 %s166, 1
        %s1396 = scalar_lea.sflag [#allocation7], %s1395
        %s1397 = sand.u32 %s166, 1
        %s1398 = smul.addr %s1397, 16
        %s1399 = scalar_lea.vmem [#allocation6], %s1398
        // Predicated region
        $region521: #{tpu_custom_call.1} parent=39 // pred_check
          %p1400 = pneg %p176
        $region522: #{tpu_custom_call.1} parent=39 // pred_check_branch
          %1402 = sbr.rel (%p1400) target = $region524
        $region523: #{tpu_custom_call.1} parent=39 // pred_region
          %s1403 = smul.u32 2, %s31
          %s1405 = ssub.s32 256, 256
          %1406 = vsyncadd %s1396, %s1405
          %s1407 = smul.addr %s32, 2
          %s1408 = sadd.s32 %s1403, %s1407
          %s1409 = smul.addr %s1408, 128
          %s1410 = scalar_lea.hbm %s7, %s1409
          %s1411 = sshll.u32 %s1399, 4
          %s1412 = int_to_ptr.vmem [resolvable:$true] %s1411
          %1417 = dma.vmem_to_hbm [thread:$0]  %s1412, 256, %s1410, %s1396, 128, 128, 8
        $region524: #{tpu_custom_call.1} parent=39 // pred_fallthru
          _
      $region40: #{tpu_custom_call.1} parent=5 // pred_fallthru
        _
      %p1418 = scmp.le.s32.totalorder 2, %s22
      // Predicated region
      $region525: #{tpu_custom_call.1} parent=5 // pred_check
        %p1419 = pneg %p1418
      $region526: #{tpu_custom_call.1} parent=5 // pred_check_branch
        %1421 = sbr.rel (%p1419) target = $region528
      $region527: #{tpu_custom_call.1} parent=5 // pred_region
        %s1422 = ssub.s32 %s22, 2
        // Predicated region
        $region529: #{tpu_custom_call.1} parent=527 // pred_check
          %p1423 = pneg %p182
        $region530: #{tpu_custom_call.1} parent=527 // pred_check_branch
          %1425 = sbr.rel (%p1423) target = $region532
        $region531: #{tpu_custom_call.1} parent=527 // pred_region
          %s1426 = sand.u32 %s167, 1
          %s1427 = scalar_lea.sflag [#allocation7], %s1426
          %s1428 = sand.u32 %s167, 1
          %s1429 = smul.addr %s1428, 16
          %s1430 = scalar_lea.vmem [#allocation6], %s1429
          %1431 = dma.done %s1427, 256
        $region532: #{tpu_custom_call.1} parent=527 // pred_fallthru
          _
      $region528: #{tpu_custom_call.1} parent=5 // pred_fallthru
        _
    $region6: #{tpu_custom_call.1} parent=1 // loop_footer
      %s26 = sadd.s32 1, %s22
    $region7: #{tpu_custom_call.1} parent=1 // loop_footer_branch
      %21 = sbr.rel target = $region3
    $region8: #{tpu_custom_call.1} parent=1 // loop_exit
      _
    %1432 = vsyncpa [#allocation7], 1
    %s1433 = scalar_lea.sflag [#allocation7], 1
    %1434 = vsyncpa %s1433, 1
  %1435 = vsyncmov [#allocation3]
  %s1436 = vpop.sfrf %1435
  %p1437 = scmp.eq.s32.totalorder %s1436, 0
  %p1438 = pneg %p1437
  %1440 = shalt.err (%p1438)
  %s1441 = scalar_lea.sflag [#allocation3], 1
  %1442 = vsyncmov %s1441
  %s1443 = vpop.sfrf %1442
  %p1444 = scmp.eq.s32.totalorder %s1443, 0
  %p1445 = pneg %p1444
  %1447 = shalt.err (%p1445)

</llo_original>
